<compile_context>
chip_gen: v7x
topology: tpu7x:2x2x1
jax: 0.10.0
libtpu: 0.0.40
codegen_flags: <defaults>
</compile_context>

<pallas_src>
import jax
import jax.numpy as jnp
from jax.experimental import pallas as pl
from jax.experimental.pallas import tpu as pltpu

# Activation dtype of the data plane.  float32 is numerically safest; on v6e / v7x this
# can be switched to jnp.bfloat16 to halve HBM/DMA traffic (MXU accumulation and the
# bias/ReLU/residual epilogue stay in f32 inside the kernels either way).
ACT_DTYPE = jnp.float32

# VMEM budget for the in-kernel folded-patch scratch; keeps per-step VMEM bounded so the
# kernels also work at realistic resolutions (v7x has only 64 MiB physical VMEM).
_PATCH_SCRATCH_BUDGET = 4 * 1024 * 1024


def _pick_tile_h(h_out, w_cols, k_total, extra_rows=0):
    """Largest divisor of h_out whose folded-patch scratch stays under the VMEM budget."""
    best = 1
    for th in range(1, h_out + 1):
        if h_out % th == 0 and (th + extra_rows) * w_cols * k_total * 4 <= _PATCH_SCRATCH_BUDGET:
            best = th
    return best


# --------------------------------------------------------------------------------------
# Generic fused conv kernel: folded-K single matmul + bias (+ReLU) (+residual) epilogue.
# --------------------------------------------------------------------------------------
def _make_conv_kernel(n_in, cins, taps, tile_h, wo, cout, relu, has_res, use_scratch):
    m = tile_h * wo

    def kernel(*refs):
        xs = refs[:n_in]
        w_ref = refs[n_in]
        b_ref = refs[n_in + 1]
        idx = n_in + 2
        r_ref = None
        if has_res:
            r_ref = refs[idx]
            idx += 1
        o_ref = refs[idx]
        idx += 1

        r0 = pl.program_id(1) * tile_h

        if use_scratch:
            p_ref = refs[idx]
            # In-VMEM im2col: fold every (input, tap) pair onto the contraction axis.
            col = 0
            for i in range(n_in):
                c = cins[i]
                for (ki, kj) in taps[i]:
                    blk = xs[i][0, pl.ds(r0 + ki, tile_h), pl.ds(kj, wo), :]
                    p_ref[:, col:col + c] = blk.reshape(m, c).astype(p_ref.dtype)
                    col += c
            lhs = p_ref[...]
        else:  # single input, single tap (1x1 conv) -> no scratch copy needed
            (ki, kj) = taps[0][0]
            lhs = xs[0][0, pl.ds(r0 + ki, tile_h), pl.ds(kj, wo), :].reshape(m, cins[0])

        acc = jnp.dot(lhs, w_ref[...], preferred_element_type=jnp.float32)
        acc = acc + b_ref[...].astype(jnp.float32)
        if relu:
            acc = jnp.maximum(acc, 0.0)
        acc = acc.reshape(tile_h, wo, cout)
        if has_res:
            acc = acc + r_ref[0].astype(jnp.float32)
        o_ref[0] = acc.astype(o_ref.dtype)

    return kernel


def fused_conv(inputs, w_folded, b, out_hw, relu, residual=None):
    """inputs: list of (x_padded (N,Hp,Wp,Cin), taps=[(ki,kj),...]); output pixel (r,c)
    reads x_padded[r+ki, c+kj, :].  w_folded: (sum_i len(taps_i)*Cin_i, Cout)."""
    Ho, Wo = out_hw
    N = inputs[0][0].shape[0]
    dtype = inputs[0][0].dtype
    cins = tuple(int(x.shape[-1]) for x, _ in inputs)
    taps = tuple(tuple(t) for _, t in inputs)
    k_total = int(sum(len(t) * c for t, c in zip(taps, cins)))
    cout = int(w_folded.shape[-1])
    assert w_folded.shape[0] == k_total
    # The fused residual add happens AFTER the (optional) ReLU; this network only fuses
    # residuals into relu=False convs, so guard against silent misuse.
    assert not (relu and residual is not None)

    tile_h = _pick_tile_h(Ho, Wo, k_total)
    ht = Ho // tile_h
    n_in = len(inputs)
    use_scratch = sum(len(t) for t in taps) > 1

    kernel = _make_conv_kernel(n_in, cins, taps, tile_h, Wo, cout, relu,
                               residual is not None, use_scratch)

    in_specs = []
    args = []
    for x, _ in inputs:
        _, hp, wp, c = x.shape
        # Constant block index along the tile axis -> the (padded) image is fetched once
        # per sample and stays resident in VMEM across all its spatial tiles.
        in_specs.append(pl.BlockSpec((1, hp, wp, c), lambda n, t: (n, 0, 0, 0)))
        args.append(x)
    in_specs.append(pl.BlockSpec((k_total, cout), lambda n, t: (0, 0)))
    args.append(w_folded.astype(dtype))
    in_specs.append(pl.BlockSpec((1, cout), lambda n, t: (0, 0)))
    args.append(b.reshape(1, cout).astype(jnp.float32))
    if residual is not None:
        in_specs.append(pl.BlockSpec((1, tile_h, Wo, cout), lambda n, t: (n, t, 0, 0)))
        args.append(residual)

    scratch = [pltpu.VMEM((tile_h * Wo, k_total), dtype)] if use_scratch else []

    return pl.pallas_call(
        kernel,
        out_shape=jax.ShapeDtypeStruct((N, Ho, Wo, cout), dtype),
        grid=(N, ht),
        in_specs=in_specs,
        out_specs=pl.BlockSpec((1, tile_h, Wo, cout), lambda n, t: (n, t, 0, 0)),
        scratch_shapes=scratch,
        compiler_params=pltpu.CompilerParams(
            dimension_semantics=("parallel", "parallel")),
    )(*args)


# --------------------------------------------------------------------------------------
# Fully fused ResBlock: conv3x3 + ReLU + conv3x3 + skip in ONE pallas_call.
# --------------------------------------------------------------------------------------
def _make_resblock_kernel(C, tile_h, wo, ht):
    m1 = (tile_h + 2) * (wo + 2)
    m2 = tile_h * wo

    def kernel(x_ref, w1_ref, b1_ref, w2_ref, b2_ref, o_ref, p1_ref, y_ref, p2_ref):
        t = pl.program_id(1)
        r0 = t * tile_h

        # ---- conv1 (3x3 + bias + ReLU) on the tile plus a 1-pixel halo ring ----------
        col = 0
        for ki in range(3):
            for kj in range(3):
                blk = x_ref[0, pl.ds(r0 + ki, tile_h + 2), pl.ds(kj, wo + 2), :]
                p1_ref[:, col:col + C] = blk.reshape(m1, C).astype(p1_ref.dtype)
                col += C
        y = jnp.dot(p1_ref[...], w1_ref[...], preferred_element_type=jnp.float32)
        y = jnp.maximum(y + b1_ref[...], 0.0).reshape(tile_h + 2, wo + 2, C)

        # conv2 zero-pads the *intermediate*, so halo pixels that fall outside the image
        # must be zero (left/right always; top/bottom only on the first/last tile).
        rows = jax.lax.broadcasted_iota(jnp.int32, (tile_h + 2, wo + 2, 1), 0)
        cols = jax.lax.broadcasted_iota(jnp.int32, (tile_h + 2, wo + 2, 1), 1)
        valid = (cols >= 1) & (cols <= wo)
        valid = valid & ((t > 0) | (rows >= 1))
        valid = valid & ((t < ht - 1) | (rows <= tile_h))
        # Intermediate activation never leaves VMEM.
        y_ref[...] = jnp.where(valid, y, 0.0).astype(y_ref.dtype)

        # ---- conv2 (3x3 + bias) + skip connection, fused epilogue ---------------------
        col = 0
        for ki in range(3):
            for kj in range(3):
                blk = y_ref[ki:ki + tile_h, kj:kj + wo, :]
                p2_ref[:, col:col + C] = blk.reshape(m2, C).astype(p2_ref.dtype)
                col += C
        out = jnp.dot(p2_ref[...], w2_ref[...], preferred_element_type=jnp.float32)
        out = (out + b2_ref[...]).reshape(tile_h, wo, C)
        skip = x_ref[0, pl.ds(r0 + 2, tile_h), pl.ds(2, wo), :]
        out = out + skip.astype(jnp.float32)
        o_ref[0] = out.astype(o_ref.dtype)

    return kernel


def res_block(x, p):
    N, H, W, C = x.shape
    xp = jnp.pad(x, ((0, 0), (2, 2), (2, 2), (0, 0)))
    k_total = 9 * C
    tile_h = _pick_tile_h(H, W + 2, k_total, extra_rows=2)
    ht = H // tile_h
    dt = x.dtype
    kernel = _make_resblock_kernel(C, tile_h, W, ht)
    w1 = p["conv1"]["w"].reshape(k_total, C).astype(dt)
    w2 = p["conv2"]["w"].reshape(k_total, C).astype(dt)
    b1 = p["conv1"]["b"].reshape(1, C).astype(jnp.float32)
    b2 = p["conv2"]["b"].reshape(1, C).astype(jnp.float32)
    hp, wp = H + 4, W + 4
    return pl.pallas_call(
        kernel,
        out_shape=jax.ShapeDtypeStruct((N, H, W, C), dt),
        grid=(N, ht),
        in_specs=[
            pl.BlockSpec((1, hp, wp, C), lambda n, t: (n, 0, 0, 0)),
            pl.BlockSpec((k_total, C), lambda n, t: (0, 0)),
            pl.BlockSpec((1, C), lambda n, t: (0, 0)),
            pl.BlockSpec((k_total, C), lambda n, t: (0, 0)),
            pl.BlockSpec((1, C), lambda n, t: (0, 0)),
        ],
        out_specs=pl.BlockSpec((1, tile_h, W, C), lambda n, t: (n, t, 0, 0)),
        scratch_shapes=[
            pltpu.VMEM(((tile_h + 2) * (W + 2), k_total), dt),
            pltpu.VMEM((tile_h + 2, W + 2, C), dt),
            pltpu.VMEM((tile_h * W, k_total), dt),
        ],
        compiler_params=pltpu.CompilerParams(
            dimension_semantics=("parallel", "parallel")),
    )(xp, w1, b1, w2, b2)


# --------------------------------------------------------------------------------------
# InstanceNorm2d (affine).  One sample per grid step; full-image statistics (correct).
# If spatially tiled this would need a two-pass / cross-tile reduction.
# --------------------------------------------------------------------------------------
def _instnorm_kernel(x_ref, g_ref, b_ref, o_ref):
    x = x_ref[0].astype(jnp.float32)                        # (H*W, C)
    mean = jnp.mean(x, axis=0, keepdims=True)
    var = jnp.mean(jnp.square(x - mean), axis=0, keepdims=True)
    y = (x - mean) * jax.lax.rsqrt(var + 1e-5)
    o_ref[0] = (y * g_ref[...] + b_ref[...]).astype(o_ref.dtype)


def instance_norm(x, gamma, beta):
    N, H, W, C = x.shape
    xf = x.reshape(N, H * W, C)
    out = pl.pallas_call(
        _instnorm_kernel,
        out_shape=jax.ShapeDtypeStruct((N, H * W, C), x.dtype),
        grid=(N,),
        in_specs=[
            pl.BlockSpec((1, H * W, C), lambda n: (n, 0, 0)),
            pl.BlockSpec((1, C), lambda n: (0, 0)),
            pl.BlockSpec((1, C), lambda n: (0, 0)),
        ],
        out_specs=pl.BlockSpec((1, H * W, C), lambda n: (n, 0, 0)),
        compiler_params=pltpu.CompilerParams(dimension_semantics=("parallel",)),
    )(xf, gamma.reshape(1, C).astype(jnp.float32), beta.reshape(1, C).astype(jnp.float32))
    return out.reshape(N, H, W, C)


# --------------------------------------------------------------------------------------
# Conv wrappers (JAX glue is padding / weight folding only; all compute is in Pallas).
# --------------------------------------------------------------------------------------
def basic_conv(x, p, relu, residual=None):
    """stride-1 Conv2d(k, padding=k//2) + bias (+ReLU) (+fused residual add)."""
    N, H, W, Cin = x.shape
    k = p["k"]
    pad = k // 2
    xp = jnp.pad(x, ((0, 0), (pad, pad), (pad, pad), (0, 0))) if pad else x
    taps = [(ki, kj) for ki in range(k) for kj in range(k)]
    cout = p["w"].shape[-1]
    w_f = p["w"].reshape(k * k * Cin, cout)
    return fused_conv([(xp, taps)], w_f, p["b"], (H, W), relu, residual)


def strided_conv(x, p, relu):
    """stride-2 Conv2d(k=3, padding=1) via polyphase decomposition -> one fused kernel."""
    N, H, W, Cin = x.shape
    k = p["k"]
    assert k == 3 and H % 2 == 0 and W % 2 == 0
    Ho, Wo = H // 2, W // 2
    xp = jnp.pad(x, ((0, 0), (1, 1), (1, 1), (0, 0)))
    w = p["w"]                                              # (9, Cin, Cout)
    cout = w.shape[-1]
    inputs, w_parts = [], []
    for ph in range(2):
        for pw in range(2):
            phase = xp[:, ph::2, pw::2, :]
            taps, wsel = [], []
            for a in range((k - ph + 1) // 2):
                for b_ in range((k - pw + 1) // 2):
                    taps.append((a, b_))
                    wsel.append(w[(2 * a + ph) * k + (2 * b_ + pw)])
            inputs.append((phase, taps))
            w_parts.append(jnp.stack(wsel, 0).reshape(-1, cout))
    w_f = jnp.concatenate(w_parts, axis=0)
    return fused_conv(inputs, w_f, p["b"], (Ho, Wo), relu)


def transpose_conv(x, p, relu):
    """ConvTranspose2d(k=4, s=2, p=1) via sub-pixel decomposition: 4 stride-1 convs with
    2x2 tap subsets whose outputs are interleaved (no zero-inserted buffer, 4x fewer MACs)."""
    N, H, W, Cin = x.shape
    k = p["k"]
    assert k == 4
    w = p["w"]                                              # (16, Cin, Cout), dense-conv taps
    cout = w.shape[-1]
    xp = jnp.pad(x, ((0, 0), (1, 1), (1, 1), (0, 0)))
    outs = []
    for a in range(2):
        for b_ in range(2):
            taps = [(a + dy, b_ + dx) for dy in range(2) for dx in range(2)]
            wsel = jnp.stack([w[(a + 2 * dy) * k + (b_ + 2 * dx)]
                              for dy in range(2) for dx in range(2)], 0)
            w_f = wsel.reshape(4 * Cin, cout)
            outs.append(fused_conv([(xp, taps)], w_f, p["b"], (H, W), relu))
    y = jnp.stack(outs, axis=3).reshape(N, H, W, 2, 2, cout)
    y = jnp.transpose(y, (0, 1, 3, 2, 4, 5)).reshape(N, 2 * H, 2 * W, cout)
    return y


def fam(x1, x2, p):
    """FAM: 3x3 conv on the channel-concat, WITHOUT materializing the concat in HBM."""
    N, H, W, C = x1.shape
    k = p["k"]
    pad = k // 2
    taps = [(ki, kj) for ki in range(k) for kj in range(k)]
    xp1 = jnp.pad(x1, ((0, 0), (pad, pad), (pad, pad), (0, 0)))
    xp2 = jnp.pad(x2, ((0, 0), (pad, pad), (pad, pad), (0, 0)))
    w = p["w"]                                              # (k*k, 2C, Cout)
    cout = w.shape[-1]
    w_f = jnp.concatenate([w[:, :C, :].reshape(k * k * C, cout),
                           w[:, C:, :].reshape(k * k * C, cout)], axis=0)
    return fused_conv([(xp1, taps), (xp2, taps)], w_f, p["b"], (H, W), relu=False)


def concat_conv1x1(x1, x2, p, relu):
    """1x1 conv on the channel-concat, without materializing the concat in HBM."""
    N, H, W, C1 = x1.shape
    C2 = x2.shape[-1]
    cout = p["w"].shape[-1]
    # Fold order (input-0 channels, then input-1 channels) matches the concat order.
    w_f = p["w"].reshape(C1 + C2, cout)
    return fused_conv([(x1, [(0, 0)]), (x2, [(0, 0)])], w_f, p["b"], (H, W), relu)


# --------------------------------------------------------------------------------------
# Network modules
# --------------------------------------------------------------------------------------
def eb_db_block(x, blocks):
    for p in blocks:
        x = res_block(x, p)
    return x


def scm_forward(x, p):
    y = basic_conv(x, p["convs"][0], relu=True)
    y = basic_conv(y, p["convs"][1], relu=True)
    y = basic_conv(y, p["convs"][2], relu=True)
    y = basic_conv(y, p["convs"][3], relu=False)
    return instance_norm(y, p["gamma"], p["beta"])


def network_forward(params, x_nchw):
    """pro_img=None path of Network.forward.  Input / outputs are NCHW."""
    x = jnp.transpose(x_nchw, (0, 2, 3, 1)).astype(ACT_DTYPE)   # -> NHWC
    x_adjust = x

    # F.interpolate(scale_factor=0.5, mode='nearest') == ::2 subsampling
    x_2 = x_adjust[:, ::2, ::2, :]
    x_4 = x_2[:, ::2, ::2, :]

    z2 = scm_forward(x_2, params["SCM2"])
    z4 = scm_forward(x_4, params["SCM1"])

    outputs = []

    x_ = basic_conv(x_adjust, params["feat_extract"][0], relu=True)
    res1 = eb_db_block(x_, params["Encoder"][0])

    z = strided_conv(res1, params["feat_extract"][1], relu=True)
    z = fam(z, z2, params["FAM2"])
    res2 = eb_db_block(z, params["Encoder"][1])

    z = strided_conv(res2, params["feat_extract"][2], relu=True)
    z = fam(z, z4, params["FAM1"])
    z = eb_db_block(z, params["Encoder"][2])

    z = eb_db_block(z, params["Decoder"][0])
    out4 = basic_conv(z, params["ConvsOut"][0], relu=False, residual=x_4)   # fused z_+x_4
    z = transpose_conv(z, params["feat_extract"][3], relu=True)
    outputs.append(out4)

    z = concat_conv1x1(z, res2, params["Convs"][0], relu=True)
    z = eb_db_block(z, params["Decoder"][1])
    out2 = basic_conv(z, params["ConvsOut"][1], relu=False, residual=x_2)   # fused z_+x_2
    z = transpose_conv(z, params["feat_extract"][4], relu=True)
    outputs.append(out2)

    z = concat_conv1x1(z, res1, params["Convs"][1], relu=True)
    z = eb_db_block(z, params["Decoder"][2])
    out1 = basic_conv(z, params["feat_extract"][5], relu=False, residual=x)  # fused z+x
    outputs.append(out1)

    return [jnp.transpose(o, (0, 3, 1, 2)) for o in outputs]               # back to NCHW


# --------------------------------------------------------------------------------------
# Deterministic parameter construction
# --------------------------------------------------------------------------------------
def init_conv(key, k, cin, cout):
    std = 0.5 * (2.0 / (k * k * cin)) ** 0.5
    w = jax.random.normal(key, (k * k, cin, cout), jnp.float32) * std
    b = jnp.zeros((cout,), jnp.float32)
    return {"w": w, "b": b, "k": k}


def init_network_params(key, base=32, num_res=8):
    keys = iter(jax.random.split(key, 1024))
    nk = lambda: next(keys)

    def res_params(c):
        return {"conv1": init_conv(nk(), 3, c, c), "conv2": init_conv(nk(), 3, c, c)}

    def block_params(c):
        return [res_params(c) for _ in range(num_res)]

    def scm_params(out_plane):
        return {
            "convs": [
                init_conv(nk(), 3, 3, out_plane // 4),
                init_conv(nk(), 1, out_plane // 4, out_plane // 2),
                init_conv(nk(), 3, out_plane // 2, out_plane // 2),
                init_conv(nk(), 1, out_plane // 2, out_plane),
            ],
            "gamma": jnp.ones((out_plane,), jnp.float32),
            "beta": jnp.zeros((out_plane,), jnp.float32),
        }

    return {
        "Encoder": [block_params(base), block_params(base * 2), block_params(base * 4)],
        "Decoder": [block_params(base * 4), block_params(base * 2), block_params(base)],
        "feat_extract": [
            init_conv(nk(), 3, 3, base),
            init_conv(nk(), 3, base, base * 2),
            init_conv(nk(), 3, base * 2, base * 4),
            init_conv(nk(), 4, base * 4, base * 2),   # transpose conv (dense-conv layout)
            init_conv(nk(), 4, base * 2, base),       # transpose conv (dense-conv layout)
            init_conv(nk(), 3, base, 3),
        ],
        "Convs": [init_conv(nk(), 1, base * 4, base * 2), init_conv(nk(), 1, base * 2, base)],
        "ConvsOut": [init_conv(nk(), 3, base * 4, 3), init_conv(nk(), 3, base * 2, 3)],
        "FAM1": init_conv(nk(), 3, base * 8, base * 4),
        "FAM2": init_conv(nk(), 3, base * 4, base * 2),
        "SCM1": scm_params(base * 4),
        "SCM2": scm_params(base * 2),
    }


# --------------------------------------------------------------------------------------
# Reference implementations (plain JAX) used only for self-checking the fused kernels.
# --------------------------------------------------------------------------------------
def _ref_conv(x, w_taps, b, k, stride=1):
    w = w_taps.reshape(k, k, w_taps.shape[1], w_taps.shape[2])
    y = jax.lax.conv_general_dilated(
        x, w, window_strides=(stride, stride), padding=[(k // 2, k // 2)] * 2,
        dimension_numbers=("NHWC", "HWIO", "NHWC"))
    return y + b


def _ref_tconv(x, w_taps, b):
    k = 4
    w = w_taps.reshape(k, k, w_taps.shape[1], w_taps.shape[2])
    y = jax.lax.conv_general_dilated(
        x, w, window_strides=(1, 1), padding=[(2, 2), (2, 2)], lhs_dilation=(2, 2),
        dimension_numbers=("NHWC", "HWIO", "NHWC"))
    return y + b


# --------------------------------------------------------------------------------------
if __name__ == "__main__":
    key = jax.random.PRNGKey(0)
    pkey, xkey, tkey = jax.random.split(key, 3)
    tol = dict(atol=5e-2, rtol=5e-2)   # loose: only guards against structural/indexing bugs

    # --- self-tests of the fused kernels against lax.conv references -------------------
    tkeys = jax.random.split(tkey, 6)
    xt = jax.random.normal(tkeys[0], (1, 16, 16, 16), jnp.float32)
    pt = init_conv(tkeys[1], 3, 16, 32)
    assert jnp.allclose(basic_conv(xt, pt, relu=False),
                        _ref_conv(xt, pt["w"], pt["b"], 3), **tol)
    assert jnp.allclose(strided_conv(xt, pt, relu=True),
                        jnp.maximum(_ref_conv(xt, pt["w"], pt["b"], 3, stride=2), 0.0), **tol)
    pt4 = init_conv(tkeys[2], 4, 16, 8)
    assert jnp.allclose(transpose_conv(xt, pt4, relu=False),
                        _ref_tconv(xt, pt4["w"], pt4["b"]), **tol)
    # ResBlock with the spatial tiling actually engaged (64x64, C=32 -> 2 row tiles)
    xb = jax.random.normal(tkeys[3], (1, 64, 64, 32), jnp.float32)
    pb = {"conv1": init_conv(tkeys[4], 3, 32, 32), "conv2": init_conv(tkeys[5], 3, 32, 32)}
    yref = jnp.maximum(_ref_conv(xb, pb["conv1"]["w"], pb["conv1"]["b"], 3), 0.0)
    assert jnp.allclose(res_block(xb, pb),
                        _ref_conv(yref, pb["conv2"]["w"], pb["conv2"]["b"], 3) + xb, **tol)

    # --- full network forward -----------------------------------------------------------
    params = init_network_params(pkey, base=32, num_res=8)
    x = jax.random.normal(xkey, (2, 3, 32, 32), jnp.float32)   # NCHW, like PyTorch
    fwd = jax.jit(lambda inp: network_forward(params, inp))
    outs = jax.block_until_ready(fwd(x))

    assert outs[0].shape == (2, 3, 8, 8)
    assert outs[1].shape == (2, 3, 16, 16)
    assert outs[2].shape == (2, 3, 32, 32)
    assert all(bool(jnp.all(jnp.isfinite(o))) for o in outs)

    print("KERNEL_OK")
</pallas_src>

<mosaic_0001>
module attributes {stable_mosaic.version = 11 : i64} {
  func.func @kernel(%arg0: i32, %arg1: i32, %arg2: memref<1x18x18x16xf32, #tpu.memory_space<vmem>>, %arg3: memref<144x32xf32, #tpu.memory_space<vmem>>, %arg4: memref<1x32xf32, #tpu.memory_space<vmem>>, %arg5: memref<1x16x16x32xf32, #tpu.memory_space<vmem>>, %arg6: memref<256x144xf32, #tpu.memory_space<vmem>>) attributes {dimension_semantics = [#tpu.dimension_semantics<parallel>, #tpu.dimension_semantics<parallel>], iteration_bounds = array<i64: 1, 1>, scalar_prefetch = 0 : i64, scratch_operands = 1 : i64, tpu.core_type = #tpu.core_type<tc>, window_params = [{transform_indices = @transform_0, window_bounds = array<i64: 1, 18, 18, 16>}, {pipeline_mode = #tpu.pipeline_mode<synchronous>, transform_indices = @transform_1, window_bounds = array<i64: 144, 32>}, {pipeline_mode = #tpu.pipeline_mode<synchronous>, transform_indices = @transform_2, window_bounds = array<i64: 1, 32>}, {transform_indices = @transform_3, window_bounds = array<i64: 1, 16, 16, 32>}]} {
    %c16_i32 = arith.constant 16 : i32
    %0 = arith.muli %arg1, %c16_i32 : i32
    %c0_i32 = arith.constant 0 : i32
    %1 = arith.addi %0, %c0_i32 : i32
    %c0 = arith.constant 0 : index
    %2 = arith.index_cast %1 : i32 to index
    %c0_0 = arith.constant 0 : index
    %c0_1 = arith.constant 0 : index
    %3 = vector.load %arg2[%c0, %2, %c0_0, %c0_1] : memref<1x18x18x16xf32, #tpu.memory_space<vmem>>, vector<1x16x16x16xf32>
    %4 = vector.shape_cast %3 : vector<1x16x16x16xf32> to vector<16x16x16xf32>
    %5 = vector.shape_cast %4 : vector<16x16x16xf32> to vector<256x16xf32>
    %c0_2 = arith.constant 0 : index
    %c0_3 = arith.constant 0 : index
    %6 = vector.load %arg6[%c0_2, %c0_3] : memref<256x144xf32, #tpu.memory_space<vmem>>, vector<256x16xf32>
    tpu.vector_store %arg6[%c0_2, %c0_3], %5 {strides = array<i32>} : memref<256x144xf32, #tpu.memory_space<vmem>>, vector<256x16xf32>,
    %c0_i32_4 = arith.constant 0 : i32
    %7 = arith.addi %0, %c0_i32_4 : i32
    %c0_5 = arith.constant 0 : index
    %8 = arith.index_cast %7 : i32 to index
    %c1 = arith.constant 1 : index
    %c0_6 = arith.constant 0 : index
    %9 = vector.load %arg2[%c0_5, %8, %c1, %c0_6] : memref<1x18x18x16xf32, #tpu.memory_space<vmem>>, vector<1x16x16x16xf32>
    %10 = vector.shape_cast %9 : vector<1x16x16x16xf32> to vector<16x16x16xf32>
    %11 = vector.shape_cast %10 : vector<16x16x16xf32> to vector<256x16xf32>
    %c0_7 = arith.constant 0 : index
    %c16 = arith.constant 16 : index
    %12 = vector.load %arg6[%c0_7, %c16] : memref<256x144xf32, #tpu.memory_space<vmem>>, vector<256x16xf32>
    tpu.vector_store %arg6[%c0_7, %c16], %11 {strides = array<i32>} : memref<256x144xf32, #tpu.memory_space<vmem>>, vector<256x16xf32>,
    %c0_i32_8 = arith.constant 0 : i32
    %13 = arith.addi %0, %c0_i32_8 : i32
    %c0_9 = arith.constant 0 : index
    %14 = arith.index_cast %13 : i32 to index
    %c2 = arith.constant 2 : index
    %c0_10 = arith.constant 0 : index
    %15 = vector.load %arg2[%c0_9, %14, %c2, %c0_10] : memref<1x18x18x16xf32, #tpu.memory_space<vmem>>, vector<1x16x16x16xf32>
    %16 = vector.shape_cast %15 : vector<1x16x16x16xf32> to vector<16x16x16xf32>
    %17 = vector.shape_cast %16 : vector<16x16x16xf32> to vector<256x16xf32>
    %c0_11 = arith.constant 0 : index
    %c32 = arith.constant 32 : index
    %18 = vector.load %arg6[%c0_11, %c32] : memref<256x144xf32, #tpu.memory_space<vmem>>, vector<256x16xf32>
    tpu.vector_store %arg6[%c0_11, %c32], %17 {strides = array<i32>} : memref<256x144xf32, #tpu.memory_space<vmem>>, vector<256x16xf32>,
    %c1_i32 = arith.constant 1 : i32
    %19 = arith.addi %0, %c1_i32 : i32
    %c0_12 = arith.constant 0 : index
    %20 = arith.index_cast %19 : i32 to index
    %c0_13 = arith.constant 0 : index
    %c0_14 = arith.constant 0 : index
    %21 = vector.load %arg2[%c0_12, %20, %c0_13, %c0_14] : memref<1x18x18x16xf32, #tpu.memory_space<vmem>>, vector<1x16x16x16xf32>
    %22 = vector.shape_cast %21 : vector<1x16x16x16xf32> to vector<16x16x16xf32>
    %23 = vector.shape_cast %22 : vector<16x16x16xf32> to vector<256x16xf32>
    %c0_15 = arith.constant 0 : index
    %c48 = arith.constant 48 : index
    %24 = vector.load %arg6[%c0_15, %c48] : memref<256x144xf32, #tpu.memory_space<vmem>>, vector<256x16xf32>
    tpu.vector_store %arg6[%c0_15, %c48], %23 {strides = array<i32>} : memref<256x144xf32, #tpu.memory_space<vmem>>, vector<256x16xf32>,
    %c1_i32_16 = arith.constant 1 : i32
    %25 = arith.addi %0, %c1_i32_16 : i32
    %c0_17 = arith.constant 0 : index
    %26 = arith.index_cast %25 : i32 to index
    %c1_18 = arith.constant 1 : index
    %c0_19 = arith.constant 0 : index
    %27 = vector.load %arg2[%c0_17, %26, %c1_18, %c0_19] : memref<1x18x18x16xf32, #tpu.memory_space<vmem>>, vector<1x16x16x16xf32>
    %28 = vector.shape_cast %27 : vector<1x16x16x16xf32> to vector<16x16x16xf32>
    %29 = vector.shape_cast %28 : vector<16x16x16xf32> to vector<256x16xf32>
    %c0_20 = arith.constant 0 : index
    %c64 = arith.constant 64 : index
    %30 = vector.load %arg6[%c0_20, %c64] : memref<256x144xf32, #tpu.memory_space<vmem>>, vector<256x16xf32>
    tpu.vector_store %arg6[%c0_20, %c64], %29 {strides = array<i32>} : memref<256x144xf32, #tpu.memory_space<vmem>>, vector<256x16xf32>,
    %c1_i32_21 = arith.constant 1 : i32
    %31 = arith.addi %0, %c1_i32_21 : i32
    %c0_22 = arith.constant 0 : index
    %32 = arith.index_cast %31 : i32 to index
    %c2_23 = arith.constant 2 : index
    %c0_24 = arith.constant 0 : index
    %33 = vector.load %arg2[%c0_22, %32, %c2_23, %c0_24] : memref<1x18x18x16xf32, #tpu.memory_space<vmem>>, vector<1x16x16x16xf32>
    %34 = vector.shape_cast %33 : vector<1x16x16x16xf32> to vector<16x16x16xf32>
    %35 = vector.shape_cast %34 : vector<16x16x16xf32> to vector<256x16xf32>
    %c0_25 = arith.constant 0 : index
    %c80 = arith.constant 80 : index
    %36 = vector.load %arg6[%c0_25, %c80] : memref<256x144xf32, #tpu.memory_space<vmem>>, vector<256x16xf32>
    tpu.vector_store %arg6[%c0_25, %c80], %35 {strides = array<i32>} : memref<256x144xf32, #tpu.memory_space<vmem>>, vector<256x16xf32>,
    %c2_i32 = arith.constant 2 : i32
    %37 = arith.addi %0, %c2_i32 : i32
    %c0_26 = arith.constant 0 : index
    %38 = arith.index_cast %37 : i32 to index
    %c0_27 = arith.constant 0 : index
    %c0_28 = arith.constant 0 : index
    %39 = vector.load %arg2[%c0_26, %38, %c0_27, %c0_28] : memref<1x18x18x16xf32, #tpu.memory_space<vmem>>, vector<1x16x16x16xf32>
    %40 = vector.shape_cast %39 : vector<1x16x16x16xf32> to vector<16x16x16xf32>
    %41 = vector.shape_cast %40 : vector<16x16x16xf32> to vector<256x16xf32>
    %c0_29 = arith.constant 0 : index
    %c96 = arith.constant 96 : index
    %42 = vector.load %arg6[%c0_29, %c96] : memref<256x144xf32, #tpu.memory_space<vmem>>, vector<256x16xf32>
    tpu.vector_store %arg6[%c0_29, %c96], %41 {strides = array<i32>} : memref<256x144xf32, #tpu.memory_space<vmem>>, vector<256x16xf32>,
    %c2_i32_30 = arith.constant 2 : i32
    %43 = arith.addi %0, %c2_i32_30 : i32
    %c0_31 = arith.constant 0 : index
    %44 = arith.index_cast %43 : i32 to index
    %c1_32 = arith.constant 1 : index
    %c0_33 = arith.constant 0 : index
    %45 = vector.load %arg2[%c0_31, %44, %c1_32, %c0_33] : memref<1x18x18x16xf32, #tpu.memory_space<vmem>>, vector<1x16x16x16xf32>
    %46 = vector.shape_cast %45 : vector<1x16x16x16xf32> to vector<16x16x16xf32>
    %47 = vector.shape_cast %46 : vector<16x16x16xf32> to vector<256x16xf32>
    %c0_34 = arith.constant 0 : index
    %c112 = arith.constant 112 : index
    %48 = vector.load %arg6[%c0_34, %c112] : memref<256x144xf32, #tpu.memory_space<vmem>>, vector<256x16xf32>
    tpu.vector_store %arg6[%c0_34, %c112], %47 {strides = array<i32>} : memref<256x144xf32, #tpu.memory_space<vmem>>, vector<256x16xf32>,
    %c2_i32_35 = arith.constant 2 : i32
    %49 = arith.addi %0, %c2_i32_35 : i32
    %c0_36 = arith.constant 0 : index
    %50 = arith.index_cast %49 : i32 to index
    %c2_37 = arith.constant 2 : index
    %c0_38 = arith.constant 0 : index
    %51 = vector.load %arg2[%c0_36, %50, %c2_37, %c0_38] : memref<1x18x18x16xf32, #tpu.memory_space<vmem>>, vector<1x16x16x16xf32>
    %52 = vector.shape_cast %51 : vector<1x16x16x16xf32> to vector<16x16x16xf32>
    %53 = vector.shape_cast %52 : vector<16x16x16xf32> to vector<256x16xf32>
    %c0_39 = arith.constant 0 : index
    %c128 = arith.constant 128 : index
    %54 = vector.load %arg6[%c0_39, %c128] : memref<256x144xf32, #tpu.memory_space<vmem>>, vector<256x16xf32>
    tpu.vector_store %arg6[%c0_39, %c128], %53 {strides = array<i32>} : memref<256x144xf32, #tpu.memory_space<vmem>>, vector<256x16xf32>,
    %c0_40 = arith.constant 0 : index
    %c0_41 = arith.constant 0 : index
    %55 = vector.load %arg6[%c0_40, %c0_41] : memref<256x144xf32, #tpu.memory_space<vmem>>, vector<256x144xf32>
    %c0_42 = arith.constant 0 : index
    %c0_43 = arith.constant 0 : index
    %56 = vector.load %arg3[%c0_42, %c0_43] : memref<144x32xf32, #tpu.memory_space<vmem>>, vector<144x32xf32>
    %cst = arith.constant dense<0.000000e+00> : vector<256x32xf32>
    %57 = tpu.matmul %55, %56, %cst {dimension_numbers = #tpu.dot_dimension_numbers<[1], [0], [0], [1], [0, 0, 1, 1], [], []>} : vector<256x144xf32>, vector<144x32xf32>, vector<256x32xf32> -> vector<256x32xf32>
    %c0_44 = arith.constant 0 : index
    %c0_45 = arith.constant 0 : index
    %58 = vector.load %arg4[%c0_44, %c0_45] : memref<1x32xf32, #tpu.memory_space<vmem>>, vector<1x32xf32>
    %59 = vector.broadcast %58 : vector<1x32xf32> to vector<256x32xf32>
    %60 = arith.addf %57, %59 : vector<256x32xf32>
    %61 = vector.shape_cast %60 : vector<256x32xf32> to vector<16x16x32xf32>
    %c0_46 = arith.constant 0 : index
    %c0_47 = arith.constant 0 : index
    %c0_48 = arith.constant 0 : index
    %c0_49 = arith.constant 0 : index
    %62 = vector.load %arg5[%c0_46, %c0_47, %c0_48, %c0_49] : memref<1x16x16x32xf32, #tpu.memory_space<vmem>>, vector<1x16x16x32xf32>
    %63 = vector.shape_cast %62 : vector<1x16x16x32xf32> to vector<16x16x32xf32>
    %64 = vector.shape_cast %61 : vector<16x16x32xf32> to vector<1x16x16x32xf32>
    tpu.vector_store %arg5[%c0_46, %c0_47, %c0_48, %c0_49], %64 {strides = array<i32>} : memref<1x16x16x32xf32, #tpu.memory_space<vmem>>, vector<1x16x16x32xf32>,
    return
  }
  func.func @transform_0(%arg0: i32, %arg1: i32) -> (i32, i32, i32, i32) {
    %c0_i32 = arith.constant 0 : i32
    %c0_i32_0 = arith.constant 0 : i32
    %c0_i32_1 = arith.constant 0 : i32
    %c0_i32_2 = arith.constant 0 : i32
    return %arg0, %c0_i32, %c0_i32_0, %c0_i32_1 : i32, i32, i32, i32
  }
  func.func @transform_1(%arg0: i32, %arg1: i32) -> (i32, i32) {
    %c0_i32 = arith.constant 0 : i32
    %c0_i32_0 = arith.constant 0 : i32
    %c0_i32_1 = arith.constant 0 : i32
    return %c0_i32, %c0_i32_0 : i32, i32
  }
  func.func @transform_2(%arg0: i32, %arg1: i32) -> (i32, i32) {
    %c0_i32 = arith.constant 0 : i32
    %c0_i32_0 = arith.constant 0 : i32
    %c0_i32_1 = arith.constant 0 : i32
    return %c0_i32, %c0_i32_0 : i32, i32
  }
  func.func @transform_3(%arg0: i32, %arg1: i32) -> (i32, i32, i32, i32) {
    %c0_i32 = arith.constant 0 : i32
    %c0_i32_0 = arith.constant 0 : i32
    %c0_i32_1 = arith.constant 0 : i32
    return %arg0, %arg1, %c0_i32, %c0_i32_0 : i32, i32, i32, i32
  }
}

</mosaic_0001>

<llo_original>
// kernel: tpu_custom_call.1
$region0: #{tpu_custom_call.1}
  #allocation0 [shape = 'u32[]', space=smem, size = 0x4, offset = 0x4, fixed_abs, tag = 'smem constant byte address 0x4 - core index']
  #allocation1 [shape = 'u32[144,128]{1,0:T(1,128)}', space=vmem, size = 0x12000, scoped, tag = 'internal scratch']
  #allocation2 [shape = 'f32[256,144]{1,0:T(8,128)}', space=vmem, size = 0x40000, scoped, tag = 'scratch operand']
  %s0 = inlined_call_operand.vmem [shape: f32[1,18,18,16], index: 0, kind: input, shape index: {}]
  %s1 = inlined_call_operand.vmem [shape: f32[144,32], index: 1, kind: input, shape index: {}]
  %s2 = inlined_call_operand.vmem [shape: f32[1,32], index: 2, kind: input, shape index: {}]
  %s3 = inlined_call_operand.hbm [shape: f32[1,16,16,32], index: 3, kind: output, shape index: {}]
  %s4 = sld [smem:[#allocation0]]
  $region22: #{tpu_custom_call.1} parent=0
    _
  %s6 = ssub.s32 1, %s4
  %s7 = scalar_select 0, %s6, %s4
  $region1: #{tpu_custom_call.1} parent=0
    #allocation3 [shape = 'u8[131072]{0}', space=vmem, size = 0x20000, scoped, tag = 'output window, operand 0, single buffered']
    #allocation4 [shape = 's32[1]{0}', space=sflag, size = 0x4, scoped, tag = 'scoped memory for tpu_custom_call.1']
    %8 = vsyncpa [#allocation4], 0
    // Predicated region
    $region2: #{tpu_custom_call.1} parent=1 // pred_check
      _
    $region3: #{tpu_custom_call.1} parent=1 // pred_check_branch
      %10 = sbr.rel (0) target = $region5
    $region4: #{tpu_custom_call.1} parent=1 // pred_region
      _
    $region5: #{tpu_custom_call.1} parent=1 // pred_fallthru
      _
    // Predicated region
    $region6: #{tpu_custom_call.1} parent=1 // pred_check
      _
    $region7: #{tpu_custom_call.1} parent=1 // pred_check_branch
      %12 = sbr.rel (0) target = $region9
    $region8: #{tpu_custom_call.1} parent=1 // pred_region
      _
    $region9: #{tpu_custom_call.1} parent=1 // pred_fallthru
      _
    // Predicated region
    $region10: #{tpu_custom_call.1} parent=1 // pred_check
      _
    $region11: #{tpu_custom_call.1} parent=1 // pred_check_branch
      %14 = sbr.rel (0) target = $region13
    $region12: #{tpu_custom_call.1} parent=1 // pred_region
      _
    $region13: #{tpu_custom_call.1} parent=1 // pred_fallthru
      _
    %s15 = smul.u32 0, 16
    %s16 = smul.u32 %s15, 24
    %s17 = scalar_lea.vmem %s0, %s16
    %v18 = vld [vmem:[%s17] sm:$0xff]
    %v19 = vld [vmem:[%s17 + $0x8] sm:$0xff]
    %v20 = vld [vmem:[%s17 + $0x18] sm:$0xff]
    %v21 = vld [vmem:[%s17 + $0x20] sm:$0xff]
    %v22 = vld [vmem:[%s17 + $0x30] sm:$0xff]
    %v23 = vld [vmem:[%s17 + $0x38] sm:$0xff]
    %v24 = vld [vmem:[%s17 + $0x48] sm:$0xff]
    %v25 = vld [vmem:[%s17 + $0x50] sm:$0xff]
    %v26 = vld [vmem:[%s17 + $0x60] sm:$0xff]
    %v27 = vld [vmem:[%s17 + $0x68] sm:$0xff]
    %v28 = vld [vmem:[%s17 + $0x78] sm:$0xff]
    %v29 = vld [vmem:[%s17 + $0x80] sm:$0xff]
    %v30 = vld [vmem:[%s17 + $0x90] sm:$0xff]
    %v31 = vld [vmem:[%s17 + $0x98] sm:$0xff]
    %v32 = vld [vmem:[%s17 + $0xa8] sm:$0xff]
    %v33 = vld [vmem:[%s17 + $0xb0] sm:$0xff]
    %v34 = vld [vmem:[%s17 + $0xc0] sm:$0xff]
    %v35 = vld [vmem:[%s17 + $0xc8] sm:$0xff]
    %v36 = vld [vmem:[%s17 + $0xd8] sm:$0xff]
    %v37 = vld [vmem:[%s17 + $0xe0] sm:$0xff]
    %v38 = vld [vmem:[%s17 + $0xf0] sm:$0xff]
    %v39 = vld [vmem:[%s17 + $0xf8] sm:$0xff]
    %v40 = vld [vmem:[%s17 + $0x108] sm:$0xff]
    %v41 = vld [vmem:[%s17 + $0x110] sm:$0xff]
    %v42 = vld [vmem:[%s17 + $0x120] sm:$0xff]
    %v43 = vld [vmem:[%s17 + $0x128] sm:$0xff]
    %v44 = vld [vmem:[%s17 + $0x138] sm:$0xff]
    %v45 = vld [vmem:[%s17 + $0x140] sm:$0xff]
    %v46 = vld [vmem:[%s17 + $0x150] sm:$0xff]
    %v47 = vld [vmem:[%s17 + $0x158] sm:$0xff]
    %v48 = vld [vmem:[%s17 + $0x168] sm:$0xff]
    %v49 = vld [vmem:[%s17 + $0x170] sm:$0xff]
    %vm50 = vcmask 130048
    %51 = vst.msk [vmem:[#allocation2] sm:$0xff] %vm50, %v18
    %52 = vst.msk [vmem:[#allocation2 + $0x10] sm:$0xff] %vm50, %v19
    %53 = vst.msk [vmem:[#allocation2 + $0x20] sm:$0xff] %vm50, %v20
    %54 = vst.msk [vmem:[#allocation2 + $0x30] sm:$0xff] %vm50, %v21
    %55 = vst.msk [vmem:[#allocation2 + $0x40] sm:$0xff] %vm50, %v22
    %56 = vst.msk [vmem:[#allocation2 + $0x50] sm:$0xff] %vm50, %v23
    %57 = vst.msk [vmem:[#allocation2 + $0x60] sm:$0xff] %vm50, %v24
    %58 = vst.msk [vmem:[#allocation2 + $0x70] sm:$0xff] %vm50, %v25
    %59 = vst.msk [vmem:[#allocation2 + $0x80] sm:$0xff] %vm50, %v26
    %60 = vst.msk [vmem:[#allocation2 + $0x90] sm:$0xff] %vm50, %v27
    %61 = vst.msk [vmem:[#allocation2 + $0xa0] sm:$0xff] %vm50, %v28
    %62 = vst.msk [vmem:[#allocation2 + $0xb0] sm:$0xff] %vm50, %v29
    %63 = vst.msk [vmem:[#allocation2 + $0xc0] sm:$0xff] %vm50, %v30
    %64 = vst.msk [vmem:[#allocation2 + $0xd0] sm:$0xff] %vm50, %v31
    %65 = vst.msk [vmem:[#allocation2 + $0xe0] sm:$0xff] %vm50, %v32
    %66 = vst.msk [vmem:[#allocation2 + $0xf0] sm:$0xff] %vm50, %v33
    %67 = vst.msk [vmem:[#allocation2 + $0x100] sm:$0xff] %vm50, %v34
    %68 = vst.msk [vmem:[#allocation2 + $0x110] sm:$0xff] %vm50, %v35
    %69 = vst.msk [vmem:[#allocation2 + $0x120] sm:$0xff] %vm50, %v36
    %70 = vst.msk [vmem:[#allocation2 + $0x130] sm:$0xff] %vm50, %v37
    %71 = vst.msk [vmem:[#allocation2 + $0x140] sm:$0xff] %vm50, %v38
    %72 = vst.msk [vmem:[#allocation2 + $0x150] sm:$0xff] %vm50, %v39
    %73 = vst.msk [vmem:[#allocation2 + $0x160] sm:$0xff] %vm50, %v40
    %74 = vst.msk [vmem:[#allocation2 + $0x170] sm:$0xff] %vm50, %v41
    %75 = vst.msk [vmem:[#allocation2 + $0x180] sm:$0xff] %vm50, %v42
    %76 = vst.msk [vmem:[#allocation2 + $0x190] sm:$0xff] %vm50, %v43
    %77 = vst.msk [vmem:[#allocation2 + $0x1a0] sm:$0xff] %vm50, %v44
    %78 = vst.msk [vmem:[#allocation2 + $0x1b0] sm:$0xff] %vm50, %v45
    %79 = vst.msk [vmem:[#allocation2 + $0x1c0] sm:$0xff] %vm50, %v46
    %80 = vst.msk [vmem:[#allocation2 + $0x1d0] sm:$0xff] %vm50, %v47
    %81 = vst.msk [vmem:[#allocation2 + $0x1e0] sm:$0xff] %vm50, %v48
    %82 = vst.msk [vmem:[#allocation2 + $0x1f0] sm:$0xff] %vm50, %v49
    %v83 = vld [vmem:[%s17 + $0x1] sm:$0xff]
    %v84 = vld [vmem:[%s17 + $0x9] sm:$0xff]
    %v85 = vld [vmem:[%s17 + $0x19] sm:$0xff]
    %v86 = vld [vmem:[%s17 + $0x21] sm:$0xff]
    %v87 = vld [vmem:[%s17 + $0x31] sm:$0xff]
    %v88 = vld [vmem:[%s17 + $0x39] sm:$0xff]
    %v89 = vld [vmem:[%s17 + $0x49] sm:$0xff]
    %v90 = vld [vmem:[%s17 + $0x51] sm:$0xff]
    %v91 = vld [vmem:[%s17 + $0x61] sm:$0xff]
    %v92 = vld [vmem:[%s17 + $0x69] sm:$0xff]
    %v93 = vld [vmem:[%s17 + $0x79] sm:$0xff]
    %v94 = vld [vmem:[%s17 + $0x81] sm:$0xff]
    %v95 = vld [vmem:[%s17 + $0x91] sm:$0xff]
    %v96 = vld [vmem:[%s17 + $0x99] sm:$0xff]
    %v97 = vld [vmem:[%s17 + $0xa9] sm:$0xff]
    %v98 = vld [vmem:[%s17 + $0xb1] sm:$0xff]
    %v99 = vld [vmem:[%s17 + $0xc1] sm:$0xff]
    %v100 = vld [vmem:[%s17 + $0xc9] sm:$0xff]
    %v101 = vld [vmem:[%s17 + $0xd9] sm:$0xff]
    %v102 = vld [vmem:[%s17 + $0xe1] sm:$0xff]
    %v103 = vld [vmem:[%s17 + $0xf1] sm:$0xff]
    %v104 = vld [vmem:[%s17 + $0xf9] sm:$0xff]
    %v105 = vld [vmem:[%s17 + $0x109] sm:$0xff]
    %v106 = vld [vmem:[%s17 + $0x111] sm:$0xff]
    %v107 = vld [vmem:[%s17 + $0x121] sm:$0xff]
    %v108 = vld [vmem:[%s17 + $0x129] sm:$0xff]
    %v109 = vld [vmem:[%s17 + $0x139] sm:$0xff]
    %v110 = vld [vmem:[%s17 + $0x141] sm:$0xff]
    %v111 = vld [vmem:[%s17 + $0x151] sm:$0xff]
    %v112 = vld [vmem:[%s17 + $0x159] sm:$0xff]
    %v113 = vld [vmem:[%s17 + $0x169] sm:$0xff]
    %v114 = vld [vmem:[%s17 + $0x171] sm:$0xff]
    %147 = vrot.lane.b32.xlu0 %v83, 16
    %v148 = vpop.permute.xlu0 %147
    %149 = vrot.lane.b32.xlu0 %v84, 16
    %v150 = vpop.permute.xlu0 %149
    %151 = vrot.lane.b32.xlu0 %v85, 16
    %v152 = vpop.permute.xlu0 %151
    %153 = vrot.lane.b32.xlu0 %v86, 16
    %v154 = vpop.permute.xlu0 %153
    %155 = vrot.lane.b32.xlu0 %v87, 16
    %v156 = vpop.permute.xlu0 %155
    %157 = vrot.lane.b32.xlu0 %v88, 16
    %v158 = vpop.permute.xlu0 %157
    %159 = vrot.lane.b32.xlu0 %v89, 16
    %v160 = vpop.permute.xlu0 %159
    %161 = vrot.lane.b32.xlu0 %v90, 16
    %v162 = vpop.permute.xlu0 %161
    %163 = vrot.lane.b32.xlu0 %v91, 16
    %v164 = vpop.permute.xlu0 %163
    %165 = vrot.lane.b32.xlu0 %v92, 16
    %v166 = vpop.permute.xlu0 %165
    %167 = vrot.lane.b32.xlu0 %v93, 16
    %v168 = vpop.permute.xlu0 %167
    %169 = vrot.lane.b32.xlu0 %v94, 16
    %v170 = vpop.permute.xlu0 %169
    %171 = vrot.lane.b32.xlu0 %v95, 16
    %v172 = vpop.permute.xlu0 %171
    %173 = vrot.lane.b32.xlu0 %v96, 16
    %v174 = vpop.permute.xlu0 %173
    %175 = vrot.lane.b32.xlu0 %v97, 16
    %v176 = vpop.permute.xlu0 %175
    %177 = vrot.lane.b32.xlu0 %v98, 16
    %v178 = vpop.permute.xlu0 %177
    %179 = vrot.lane.b32.xlu0 %v99, 16
    %v180 = vpop.permute.xlu0 %179
    %181 = vrot.lane.b32.xlu0 %v100, 16
    %v182 = vpop.permute.xlu0 %181
    %183 = vrot.lane.b32.xlu0 %v101, 16
    %v184 = vpop.permute.xlu0 %183
    %185 = vrot.lane.b32.xlu0 %v102, 16
    %v186 = vpop.permute.xlu0 %185
    %187 = vrot.lane.b32.xlu0 %v103, 16
    %v188 = vpop.permute.xlu0 %187
    %189 = vrot.lane.b32.xlu0 %v104, 16
    %v190 = vpop.permute.xlu0 %189
    %191 = vrot.lane.b32.xlu0 %v105, 16
    %v192 = vpop.permute.xlu0 %191
    %193 = vrot.lane.b32.xlu0 %v106, 16
    %v194 = vpop.permute.xlu0 %193
    %195 = vrot.lane.b32.xlu0 %v107, 16
    %v196 = vpop.permute.xlu0 %195
    %197 = vrot.lane.b32.xlu0 %v108, 16
    %v198 = vpop.permute.xlu0 %197
    %199 = vrot.lane.b32.xlu0 %v109, 16
    %v200 = vpop.permute.xlu0 %199
    %201 = vrot.lane.b32.xlu0 %v110, 16
    %v202 = vpop.permute.xlu0 %201
    %203 = vrot.lane.b32.xlu0 %v111, 16
    %v204 = vpop.permute.xlu0 %203
    %205 = vrot.lane.b32.xlu0 %v112, 16
    %v206 = vpop.permute.xlu0 %205
    %207 = vrot.lane.b32.xlu0 %v113, 16
    %v208 = vpop.permute.xlu0 %207
    %209 = vrot.lane.b32.xlu0 %v114, 16
    %v210 = vpop.permute.xlu0 %209
    %vm243 = vcmask 261248
    %244 = vst.msk [vmem:[#allocation2] sm:$0xff] %vm243, %v148
    %245 = vst.msk [vmem:[#allocation2 + $0x10] sm:$0xff] %vm243, %v150
    %246 = vst.msk [vmem:[#allocation2 + $0x20] sm:$0xff] %vm243, %v152
    %247 = vst.msk [vmem:[#allocation2 + $0x30] sm:$0xff] %vm243, %v154
    %248 = vst.msk [vmem:[#allocation2 + $0x40] sm:$0xff] %vm243, %v156
    %249 = vst.msk [vmem:[#allocation2 + $0x50] sm:$0xff] %vm243, %v158
    %250 = vst.msk [vmem:[#allocation2 + $0x60] sm:$0xff] %vm243, %v160
    %251 = vst.msk [vmem:[#allocation2 + $0x70] sm:$0xff] %vm243, %v162
    %252 = vst.msk [vmem:[#allocation2 + $0x80] sm:$0xff] %vm243, %v164
    %253 = vst.msk [vmem:[#allocation2 + $0x90] sm:$0xff] %vm243, %v166
    %254 = vst.msk [vmem:[#allocation2 + $0xa0] sm:$0xff] %vm243, %v168
    %255 = vst.msk [vmem:[#allocation2 + $0xb0] sm:$0xff] %vm243, %v170
    %256 = vst.msk [vmem:[#allocation2 + $0xc0] sm:$0xff] %vm243, %v172
    %257 = vst.msk [vmem:[#allocation2 + $0xd0] sm:$0xff] %vm243, %v174
    %258 = vst.msk [vmem:[#allocation2 + $0xe0] sm:$0xff] %vm243, %v176
    %259 = vst.msk [vmem:[#allocation2 + $0xf0] sm:$0xff] %vm243, %v178
    %260 = vst.msk [vmem:[#allocation2 + $0x100] sm:$0xff] %vm243, %v180
    %261 = vst.msk [vmem:[#allocation2 + $0x110] sm:$0xff] %vm243, %v182
    %262 = vst.msk [vmem:[#allocation2 + $0x120] sm:$0xff] %vm243, %v184
    %263 = vst.msk [vmem:[#allocation2 + $0x130] sm:$0xff] %vm243, %v186
    %264 = vst.msk [vmem:[#allocation2 + $0x140] sm:$0xff] %vm243, %v188
    %265 = vst.msk [vmem:[#allocation2 + $0x150] sm:$0xff] %vm243, %v190
    %266 = vst.msk [vmem:[#allocation2 + $0x160] sm:$0xff] %vm243, %v192
    %267 = vst.msk [vmem:[#allocation2 + $0x170] sm:$0xff] %vm243, %v194
    %268 = vst.msk [vmem:[#allocation2 + $0x180] sm:$0xff] %vm243, %v196
    %269 = vst.msk [vmem:[#allocation2 + $0x190] sm:$0xff] %vm243, %v198
    %270 = vst.msk [vmem:[#allocation2 + $0x1a0] sm:$0xff] %vm243, %v200
    %271 = vst.msk [vmem:[#allocation2 + $0x1b0] sm:$0xff] %vm243, %v202
    %272 = vst.msk [vmem:[#allocation2 + $0x1c0] sm:$0xff] %vm243, %v204
    %273 = vst.msk [vmem:[#allocation2 + $0x1d0] sm:$0xff] %vm243, %v206
    %274 = vst.msk [vmem:[#allocation2 + $0x1e0] sm:$0xff] %vm243, %v208
    %275 = vst.msk [vmem:[#allocation2 + $0x1f0] sm:$0xff] %vm243, %v210
    %v276 = vld [vmem:[%s17 + $0x2] sm:$0xff]
    %v277 = vld [vmem:[%s17 + $0xa] sm:$0xff]
    %v278 = vld [vmem:[%s17 + $0x1a] sm:$0xff]
    %v279 = vld [vmem:[%s17 + $0x22] sm:$0xff]
    %v280 = vld [vmem:[%s17 + $0x32] sm:$0xff]
    %v281 = vld [vmem:[%s17 + $0x3a] sm:$0xff]
    %v282 = vld [vmem:[%s17 + $0x4a] sm:$0xff]
    %v283 = vld [vmem:[%s17 + $0x52] sm:$0xff]
    %v284 = vld [vmem:[%s17 + $0x62] sm:$0xff]
    %v285 = vld [vmem:[%s17 + $0x6a] sm:$0xff]
    %v286 = vld [vmem:[%s17 + $0x7a] sm:$0xff]
    %v287 = vld [vmem:[%s17 + $0x82] sm:$0xff]
    %v288 = vld [vmem:[%s17 + $0x92] sm:$0xff]
    %v289 = vld [vmem:[%s17 + $0x9a] sm:$0xff]
    %v290 = vld [vmem:[%s17 + $0xaa] sm:$0xff]
    %v291 = vld [vmem:[%s17 + $0xb2] sm:$0xff]
    %v292 = vld [vmem:[%s17 + $0xc2] sm:$0xff]
    %v293 = vld [vmem:[%s17 + $0xca] sm:$0xff]
    %v294 = vld [vmem:[%s17 + $0xda] sm:$0xff]
    %v295 = vld [vmem:[%s17 + $0xe2] sm:$0xff]
    %v296 = vld [vmem:[%s17 + $0xf2] sm:$0xff]
    %v297 = vld [vmem:[%s17 + $0xfa] sm:$0xff]
    %v298 = vld [vmem:[%s17 + $0x10a] sm:$0xff]
    %v299 = vld [vmem:[%s17 + $0x112] sm:$0xff]
    %v300 = vld [vmem:[%s17 + $0x122] sm:$0xff]
    %v301 = vld [vmem:[%s17 + $0x12a] sm:$0xff]
    %v302 = vld [vmem:[%s17 + $0x13a] sm:$0xff]
    %v303 = vld [vmem:[%s17 + $0x142] sm:$0xff]
    %v304 = vld [vmem:[%s17 + $0x152] sm:$0xff]
    %v305 = vld [vmem:[%s17 + $0x15a] sm:$0xff]
    %v306 = vld [vmem:[%s17 + $0x16a] sm:$0xff]
    %v307 = vld [vmem:[%s17 + $0x172] sm:$0xff]
    %340 = vrot.lane.b32.xlu0 %v276, 32
    %v341 = vpop.permute.xlu0 %340
    %342 = vrot.lane.b32.xlu0 %v277, 32
    %v343 = vpop.permute.xlu0 %342
    %344 = vrot.lane.b32.xlu0 %v278, 32
    %v345 = vpop.permute.xlu0 %344
    %346 = vrot.lane.b32.xlu0 %v279, 32
    %v347 = vpop.permute.xlu0 %346
    %348 = vrot.lane.b32.xlu0 %v280, 32
    %v349 = vpop.permute.xlu0 %348
    %350 = vrot.lane.b32.xlu0 %v281, 32
    %v351 = vpop.permute.xlu0 %350
    %352 = vrot.lane.b32.xlu0 %v282, 32
    %v353 = vpop.permute.xlu0 %352
    %354 = vrot.lane.b32.xlu0 %v283, 32
    %v355 = vpop.permute.xlu0 %354
    %356 = vrot.lane.b32.xlu0 %v284, 32
    %v357 = vpop.permute.xlu0 %356
    %358 = vrot.lane.b32.xlu0 %v285, 32
    %v359 = vpop.permute.xlu0 %358
    %360 = vrot.lane.b32.xlu0 %v286, 32
    %v361 = vpop.permute.xlu0 %360
    %362 = vrot.lane.b32.xlu0 %v287, 32
    %v363 = vpop.permute.xlu0 %362
    %364 = vrot.lane.b32.xlu0 %v288, 32
    %v365 = vpop.permute.xlu0 %364
    %366 = vrot.lane.b32.xlu0 %v289, 32
    %v367 = vpop.permute.xlu0 %366
    %368 = vrot.lane.b32.xlu0 %v290, 32
    %v369 = vpop.permute.xlu0 %368
    %370 = vrot.lane.b32.xlu0 %v291, 32
    %v371 = vpop.permute.xlu0 %370
    %372 = vrot.lane.b32.xlu0 %v292, 32
    %v373 = vpop.permute.xlu0 %372
    %374 = vrot.lane.b32.xlu0 %v293, 32
    %v375 = vpop.permute.xlu0 %374
    %376 = vrot.lane.b32.xlu0 %v294, 32
    %v377 = vpop.permute.xlu0 %376
    %378 = vrot.lane.b32.xlu0 %v295, 32
    %v379 = vpop.permute.xlu0 %378
    %380 = vrot.lane.b32.xlu0 %v296, 32
    %v381 = vpop.permute.xlu0 %380
    %382 = vrot.lane.b32.xlu0 %v297, 32
    %v383 = vpop.permute.xlu0 %382
    %384 = vrot.lane.b32.xlu0 %v298, 32
    %v385 = vpop.permute.xlu0 %384
    %386 = vrot.lane.b32.xlu0 %v299, 32
    %v387 = vpop.permute.xlu0 %386
    %388 = vrot.lane.b32.xlu0 %v300, 32
    %v389 = vpop.permute.xlu0 %388
    %390 = vrot.lane.b32.xlu0 %v301, 32
    %v391 = vpop.permute.xlu0 %390
    %392 = vrot.lane.b32.xlu0 %v302, 32
    %v393 = vpop.permute.xlu0 %392
    %394 = vrot.lane.b32.xlu0 %v303, 32
    %v395 = vpop.permute.xlu0 %394
    %396 = vrot.lane.b32.xlu0 %v304, 32
    %v397 = vpop.permute.xlu0 %396
    %398 = vrot.lane.b32.xlu0 %v305, 32
    %v399 = vpop.permute.xlu0 %398
    %400 = vrot.lane.b32.xlu0 %v306, 32
    %v401 = vpop.permute.xlu0 %400
    %402 = vrot.lane.b32.xlu0 %v307, 32
    %v403 = vpop.permute.xlu0 %402
    %vm436 = vcmask 392448
    %437 = vst.msk [vmem:[#allocation2] sm:$0xff] %vm436, %v341
    %438 = vst.msk [vmem:[#allocation2 + $0x10] sm:$0xff] %vm436, %v343
    %439 = vst.msk [vmem:[#allocation2 + $0x20] sm:$0xff] %vm436, %v345
    %440 = vst.msk [vmem:[#allocation2 + $0x30] sm:$0xff] %vm436, %v347
    %441 = vst.msk [vmem:[#allocation2 + $0x40] sm:$0xff] %vm436, %v349
    %442 = vst.msk [vmem:[#allocation2 + $0x50] sm:$0xff] %vm436, %v351
    %443 = vst.msk [vmem:[#allocation2 + $0x60] sm:$0xff] %vm436, %v353
    %444 = vst.msk [vmem:[#allocation2 + $0x70] sm:$0xff] %vm436, %v355
    %445 = vst.msk [vmem:[#allocation2 + $0x80] sm:$0xff] %vm436, %v357
    %446 = vst.msk [vmem:[#allocation2 + $0x90] sm:$0xff] %vm436, %v359
    %447 = vst.msk [vmem:[#allocation2 + $0xa0] sm:$0xff] %vm436, %v361
    %448 = vst.msk [vmem:[#allocation2 + $0xb0] sm:$0xff] %vm436, %v363
    %449 = vst.msk [vmem:[#allocation2 + $0xc0] sm:$0xff] %vm436, %v365
    %450 = vst.msk [vmem:[#allocation2 + $0xd0] sm:$0xff] %vm436, %v367
    %451 = vst.msk [vmem:[#allocation2 + $0xe0] sm:$0xff] %vm436, %v369
    %452 = vst.msk [vmem:[#allocation2 + $0xf0] sm:$0xff] %vm436, %v371
    %453 = vst.msk [vmem:[#allocation2 + $0x100] sm:$0xff] %vm436, %v373
    %454 = vst.msk [vmem:[#allocation2 + $0x110] sm:$0xff] %vm436, %v375
    %455 = vst.msk [vmem:[#allocation2 + $0x120] sm:$0xff] %vm436, %v377
    %456 = vst.msk [vmem:[#allocation2 + $0x130] sm:$0xff] %vm436, %v379
    %457 = vst.msk [vmem:[#allocation2 + $0x140] sm:$0xff] %vm436, %v381
    %458 = vst.msk [vmem:[#allocation2 + $0x150] sm:$0xff] %vm436, %v383
    %459 = vst.msk [vmem:[#allocation2 + $0x160] sm:$0xff] %vm436, %v385
    %460 = vst.msk [vmem:[#allocation2 + $0x170] sm:$0xff] %vm436, %v387
    %461 = vst.msk [vmem:[#allocation2 + $0x180] sm:$0xff] %vm436, %v389
    %462 = vst.msk [vmem:[#allocation2 + $0x190] sm:$0xff] %vm436, %v391
    %463 = vst.msk [vmem:[#allocation2 + $0x1a0] sm:$0xff] %vm436, %v393
    %464 = vst.msk [vmem:[#allocation2 + $0x1b0] sm:$0xff] %vm436, %v395
    %465 = vst.msk [vmem:[#allocation2 + $0x1c0] sm:$0xff] %vm436, %v397
    %466 = vst.msk [vmem:[#allocation2 + $0x1d0] sm:$0xff] %vm436, %v399
    %467 = vst.msk [vmem:[#allocation2 + $0x1e0] sm:$0xff] %vm436, %v401
    %468 = vst.msk [vmem:[#allocation2 + $0x1f0] sm:$0xff] %vm436, %v403
    %s469 = sadd.s32 %s15, 1
    %s470 = smul.u32 %s469, 24
    %s471 = scalar_lea.vmem %s0, %s470
    %v472 = vld [vmem:[%s471] sm:$0xff]
    %v473 = vld [vmem:[%s471 + $0x8] sm:$0xff]
    %v474 = vld [vmem:[%s471 + $0x18] sm:$0xff]
    %v475 = vld [vmem:[%s471 + $0x20] sm:$0xff]
    %v476 = vld [vmem:[%s471 + $0x30] sm:$0xff]
    %v477 = vld [vmem:[%s471 + $0x38] sm:$0xff]
    %v478 = vld [vmem:[%s471 + $0x48] sm:$0xff]
    %v479 = vld [vmem:[%s471 + $0x50] sm:$0xff]
    %v480 = vld [vmem:[%s471 + $0x60] sm:$0xff]
    %v481 = vld [vmem:[%s471 + $0x68] sm:$0xff]
    %v482 = vld [vmem:[%s471 + $0x78] sm:$0xff]
    %v483 = vld [vmem:[%s471 + $0x80] sm:$0xff]
    %v484 = vld [vmem:[%s471 + $0x90] sm:$0xff]
    %v485 = vld [vmem:[%s471 + $0x98] sm:$0xff]
    %v486 = vld [vmem:[%s471 + $0xa8] sm:$0xff]
    %v487 = vld [vmem:[%s471 + $0xb0] sm:$0xff]
    %v488 = vld [vmem:[%s471 + $0xc0] sm:$0xff]
    %v489 = vld [vmem:[%s471 + $0xc8] sm:$0xff]
    %v490 = vld [vmem:[%s471 + $0xd8] sm:$0xff]
    %v491 = vld [vmem:[%s471 + $0xe0] sm:$0xff]
    %v492 = vld [vmem:[%s471 + $0xf0] sm:$0xff]
    %v493 = vld [vmem:[%s471 + $0xf8] sm:$0xff]
    %v494 = vld [vmem:[%s471 + $0x108] sm:$0xff]
    %v495 = vld [vmem:[%s471 + $0x110] sm:$0xff]
    %v496 = vld [vmem:[%s471 + $0x120] sm:$0xff]
    %v497 = vld [vmem:[%s471 + $0x128] sm:$0xff]
    %v498 = vld [vmem:[%s471 + $0x138] sm:$0xff]
    %v499 = vld [vmem:[%s471 + $0x140] sm:$0xff]
    %v500 = vld [vmem:[%s471 + $0x150] sm:$0xff]
    %v501 = vld [vmem:[%s471 + $0x158] sm:$0xff]
    %v502 = vld [vmem:[%s471 + $0x168] sm:$0xff]
    %v503 = vld [vmem:[%s471 + $0x170] sm:$0xff]
    %536 = vrot.lane.b32.xlu0 %v472, 48
    %v537 = vpop.permute.xlu0 %536
    %538 = vrot.lane.b32.xlu0 %v473, 48
    %v539 = vpop.permute.xlu0 %538
    %540 = vrot.lane.b32.xlu0 %v474, 48
    %v541 = vpop.permute.xlu0 %540
    %542 = vrot.lane.b32.xlu0 %v475, 48
    %v543 = vpop.permute.xlu0 %542
    %544 = vrot.lane.b32.xlu0 %v476, 48
    %v545 = vpop.permute.xlu0 %544
    %546 = vrot.lane.b32.xlu0 %v477, 48
    %v547 = vpop.permute.xlu0 %546
    %548 = vrot.lane.b32.xlu0 %v478, 48
    %v549 = vpop.permute.xlu0 %548
    %550 = vrot.lane.b32.xlu0 %v479, 48
    %v551 = vpop.permute.xlu0 %550
    %552 = vrot.lane.b32.xlu0 %v480, 48
    %v553 = vpop.permute.xlu0 %552
    %554 = vrot.lane.b32.xlu0 %v481, 48
    %v555 = vpop.permute.xlu0 %554
    %556 = vrot.lane.b32.xlu0 %v482, 48
    %v557 = vpop.permute.xlu0 %556
    %558 = vrot.lane.b32.xlu0 %v483, 48
    %v559 = vpop.permute.xlu0 %558
    %560 = vrot.lane.b32.xlu0 %v484, 48
    %v561 = vpop.permute.xlu0 %560
    %562 = vrot.lane.b32.xlu0 %v485, 48
    %v563 = vpop.permute.xlu0 %562
    %564 = vrot.lane.b32.xlu0 %v486, 48
    %v565 = vpop.permute.xlu0 %564
    %566 = vrot.lane.b32.xlu0 %v487, 48
    %v567 = vpop.permute.xlu0 %566
    %568 = vrot.lane.b32.xlu0 %v488, 48
    %v569 = vpop.permute.xlu0 %568
    %570 = vrot.lane.b32.xlu0 %v489, 48
    %v571 = vpop.permute.xlu0 %570
    %572 = vrot.lane.b32.xlu0 %v490, 48
    %v573 = vpop.permute.xlu0 %572
    %574 = vrot.lane.b32.xlu0 %v491, 48
    %v575 = vpop.permute.xlu0 %574
    %576 = vrot.lane.b32.xlu0 %v492, 48
    %v577 = vpop.permute.xlu0 %576
    %578 = vrot.lane.b32.xlu0 %v493, 48
    %v579 = vpop.permute.xlu0 %578
    %580 = vrot.lane.b32.xlu0 %v494, 48
    %v581 = vpop.permute.xlu0 %580
    %582 = vrot.lane.b32.xlu0 %v495, 48
    %v583 = vpop.permute.xlu0 %582
    %584 = vrot.lane.b32.xlu0 %v496, 48
    %v585 = vpop.permute.xlu0 %584
    %586 = vrot.lane.b32.xlu0 %v497, 48
    %v587 = vpop.permute.xlu0 %586
    %588 = vrot.lane.b32.xlu0 %v498, 48
    %v589 = vpop.permute.xlu0 %588
    %590 = vrot.lane.b32.xlu0 %v499, 48
    %v591 = vpop.permute.xlu0 %590
    %592 = vrot.lane.b32.xlu0 %v500, 48
    %v593 = vpop.permute.xlu0 %592
    %594 = vrot.lane.b32.xlu0 %v501, 48
    %v595 = vpop.permute.xlu0 %594
    %596 = vrot.lane.b32.xlu0 %v502, 48
    %v597 = vpop.permute.xlu0 %596
    %598 = vrot.lane.b32.xlu0 %v503, 48
    %v599 = vpop.permute.xlu0 %598
    %vm632 = vcmask 523648
    %633 = vst.msk [vmem:[#allocation2] sm:$0xff] %vm632, %v537
    %634 = vst.msk [vmem:[#allocation2 + $0x10] sm:$0xff] %vm632, %v539
    %635 = vst.msk [vmem:[#allocation2 + $0x20] sm:$0xff] %vm632, %v541
    %636 = vst.msk [vmem:[#allocation2 + $0x30] sm:$0xff] %vm632, %v543
    %637 = vst.msk [vmem:[#allocation2 + $0x40] sm:$0xff] %vm632, %v545
    %638 = vst.msk [vmem:[#allocation2 + $0x50] sm:$0xff] %vm632, %v547
    %639 = vst.msk [vmem:[#allocation2 + $0x60] sm:$0xff] %vm632, %v549
    %640 = vst.msk [vmem:[#allocation2 + $0x70] sm:$0xff] %vm632, %v551
    %641 = vst.msk [vmem:[#allocation2 + $0x80] sm:$0xff] %vm632, %v553
    %642 = vst.msk [vmem:[#allocation2 + $0x90] sm:$0xff] %vm632, %v555
    %643 = vst.msk [vmem:[#allocation2 + $0xa0] sm:$0xff] %vm632, %v557
    %644 = vst.msk [vmem:[#allocation2 + $0xb0] sm:$0xff] %vm632, %v559
    %645 = vst.msk [vmem:[#allocation2 + $0xc0] sm:$0xff] %vm632, %v561
    %646 = vst.msk [vmem:[#allocation2 + $0xd0] sm:$0xff] %vm632, %v563
    %647 = vst.msk [vmem:[#allocation2 + $0xe0] sm:$0xff] %vm632, %v565
    %648 = vst.msk [vmem:[#allocation2 + $0xf0] sm:$0xff] %vm632, %v567
    %649 = vst.msk [vmem:[#allocation2 + $0x100] sm:$0xff] %vm632, %v569
    %650 = vst.msk [vmem:[#allocation2 + $0x110] sm:$0xff] %vm632, %v571
    %651 = vst.msk [vmem:[#allocation2 + $0x120] sm:$0xff] %vm632, %v573
    %652 = vst.msk [vmem:[#allocation2 + $0x130] sm:$0xff] %vm632, %v575
    %653 = vst.msk [vmem:[#allocation2 + $0x140] sm:$0xff] %vm632, %v577
    %654 = vst.msk [vmem:[#allocation2 + $0x150] sm:$0xff] %vm632, %v579
    %655 = vst.msk [vmem:[#allocation2 + $0x160] sm:$0xff] %vm632, %v581
    %656 = vst.msk [vmem:[#allocation2 + $0x170] sm:$0xff] %vm632, %v583
    %657 = vst.msk [vmem:[#allocation2 + $0x180] sm:$0xff] %vm632, %v585
    %658 = vst.msk [vmem:[#allocation2 + $0x190] sm:$0xff] %vm632, %v587
    %659 = vst.msk [vmem:[#allocation2 + $0x1a0] sm:$0xff] %vm632, %v589
    %660 = vst.msk [vmem:[#allocation2 + $0x1b0] sm:$0xff] %vm632, %v591
    %661 = vst.msk [vmem:[#allocation2 + $0x1c0] sm:$0xff] %vm632, %v593
    %662 = vst.msk [vmem:[#allocation2 + $0x1d0] sm:$0xff] %vm632, %v595
    %663 = vst.msk [vmem:[#allocation2 + $0x1e0] sm:$0xff] %vm632, %v597
    %664 = vst.msk [vmem:[#allocation2 + $0x1f0] sm:$0xff] %vm632, %v599
    %v665 = vld [vmem:[%s471 + $0x1] sm:$0xff]
    %v666 = vld [vmem:[%s471 + $0x9] sm:$0xff]
    %v667 = vld [vmem:[%s471 + $0x19] sm:$0xff]
    %v668 = vld [vmem:[%s471 + $0x21] sm:$0xff]
    %v669 = vld [vmem:[%s471 + $0x31] sm:$0xff]
    %v670 = vld [vmem:[%s471 + $0x39] sm:$0xff]
    %v671 = vld [vmem:[%s471 + $0x49] sm:$0xff]
    %v672 = vld [vmem:[%s471 + $0x51] sm:$0xff]
    %v673 = vld [vmem:[%s471 + $0x61] sm:$0xff]
    %v674 = vld [vmem:[%s471 + $0x69] sm:$0xff]
    %v675 = vld [vmem:[%s471 + $0x79] sm:$0xff]
    %v676 = vld [vmem:[%s471 + $0x81] sm:$0xff]
    %v677 = vld [vmem:[%s471 + $0x91] sm:$0xff]
    %v678 = vld [vmem:[%s471 + $0x99] sm:$0xff]
    %v679 = vld [vmem:[%s471 + $0xa9] sm:$0xff]
    %v680 = vld [vmem:[%s471 + $0xb1] sm:$0xff]
    %v681 = vld [vmem:[%s471 + $0xc1] sm:$0xff]
    %v682 = vld [vmem:[%s471 + $0xc9] sm:$0xff]
    %v683 = vld [vmem:[%s471 + $0xd9] sm:$0xff]
    %v684 = vld [vmem:[%s471 + $0xe1] sm:$0xff]
    %v685 = vld [vmem:[%s471 + $0xf1] sm:$0xff]
    %v686 = vld [vmem:[%s471 + $0xf9] sm:$0xff]
    %v687 = vld [vmem:[%s471 + $0x109] sm:$0xff]
    %v688 = vld [vmem:[%s471 + $0x111] sm:$0xff]
    %v689 = vld [vmem:[%s471 + $0x121] sm:$0xff]
    %v690 = vld [vmem:[%s471 + $0x129] sm:$0xff]
    %v691 = vld [vmem:[%s471 + $0x139] sm:$0xff]
    %v692 = vld [vmem:[%s471 + $0x141] sm:$0xff]
    %v693 = vld [vmem:[%s471 + $0x151] sm:$0xff]
    %v694 = vld [vmem:[%s471 + $0x159] sm:$0xff]
    %v695 = vld [vmem:[%s471 + $0x169] sm:$0xff]
    %v696 = vld [vmem:[%s471 + $0x171] sm:$0xff]
    %729 = vrot.lane.b32.xlu0 %v665, 64
    %v730 = vpop.permute.xlu0 %729
    %731 = vrot.lane.b32.xlu0 %v666, 64
    %v732 = vpop.permute.xlu0 %731
    %733 = vrot.lane.b32.xlu0 %v667, 64
    %v734 = vpop.permute.xlu0 %733
    %735 = vrot.lane.b32.xlu0 %v668, 64
    %v736 = vpop.permute.xlu0 %735
    %737 = vrot.lane.b32.xlu0 %v669, 64
    %v738 = vpop.permute.xlu0 %737
    %739 = vrot.lane.b32.xlu0 %v670, 64
    %v740 = vpop.permute.xlu0 %739
    %741 = vrot.lane.b32.xlu0 %v671, 64
    %v742 = vpop.permute.xlu0 %741
    %743 = vrot.lane.b32.xlu0 %v672, 64
    %v744 = vpop.permute.xlu0 %743
    %745 = vrot.lane.b32.xlu0 %v673, 64
    %v746 = vpop.permute.xlu0 %745
    %747 = vrot.lane.b32.xlu0 %v674, 64
    %v748 = vpop.permute.xlu0 %747
    %749 = vrot.lane.b32.xlu0 %v675, 64
    %v750 = vpop.permute.xlu0 %749
    %751 = vrot.lane.b32.xlu0 %v676, 64
    %v752 = vpop.permute.xlu0 %751
    %753 = vrot.lane.b32.xlu0 %v677, 64
    %v754 = vpop.permute.xlu0 %753
    %755 = vrot.lane.b32.xlu0 %v678, 64
    %v756 = vpop.permute.xlu0 %755
    %757 = vrot.lane.b32.xlu0 %v679, 64
    %v758 = vpop.permute.xlu0 %757
    %759 = vrot.lane.b32.xlu0 %v680, 64
    %v760 = vpop.permute.xlu0 %759
    %761 = vrot.lane.b32.xlu0 %v681, 64
    %v762 = vpop.permute.xlu0 %761
    %763 = vrot.lane.b32.xlu0 %v682, 64
    %v764 = vpop.permute.xlu0 %763
    %765 = vrot.lane.b32.xlu0 %v683, 64
    %v766 = vpop.permute.xlu0 %765
    %767 = vrot.lane.b32.xlu0 %v684, 64
    %v768 = vpop.permute.xlu0 %767
    %769 = vrot.lane.b32.xlu0 %v685, 64
    %v770 = vpop.permute.xlu0 %769
    %771 = vrot.lane.b32.xlu0 %v686, 64
    %v772 = vpop.permute.xlu0 %771
    %773 = vrot.lane.b32.xlu0 %v687, 64
    %v774 = vpop.permute.xlu0 %773
    %775 = vrot.lane.b32.xlu0 %v688, 64
    %v776 = vpop.permute.xlu0 %775
    %777 = vrot.lane.b32.xlu0 %v689, 64
    %v778 = vpop.permute.xlu0 %777
    %779 = vrot.lane.b32.xlu0 %v690, 64
    %v780 = vpop.permute.xlu0 %779
    %781 = vrot.lane.b32.xlu0 %v691, 64
    %v782 = vpop.permute.xlu0 %781
    %783 = vrot.lane.b32.xlu0 %v692, 64
    %v784 = vpop.permute.xlu0 %783
    %785 = vrot.lane.b32.xlu0 %v693, 64
    %v786 = vpop.permute.xlu0 %785
    %787 = vrot.lane.b32.xlu0 %v694, 64
    %v788 = vpop.permute.xlu0 %787
    %789 = vrot.lane.b32.xlu0 %v695, 64
    %v790 = vpop.permute.xlu0 %789
    %791 = vrot.lane.b32.xlu0 %v696, 64
    %v792 = vpop.permute.xlu0 %791
    %vm825 = vcmask 654848
    %826 = vst.msk [vmem:[#allocation2] sm:$0xff] %vm825, %v730
    %827 = vst.msk [vmem:[#allocation2 + $0x10] sm:$0xff] %vm825, %v732
    %828 = vst.msk [vmem:[#allocation2 + $0x20] sm:$0xff] %vm825, %v734
    %829 = vst.msk [vmem:[#allocation2 + $0x30] sm:$0xff] %vm825, %v736
    %830 = vst.msk [vmem:[#allocation2 + $0x40] sm:$0xff] %vm825, %v738
    %831 = vst.msk [vmem:[#allocation2 + $0x50] sm:$0xff] %vm825, %v740
    %832 = vst.msk [vmem:[#allocation2 + $0x60] sm:$0xff] %vm825, %v742
    %833 = vst.msk [vmem:[#allocation2 + $0x70] sm:$0xff] %vm825, %v744
    %834 = vst.msk [vmem:[#allocation2 + $0x80] sm:$0xff] %vm825, %v746
    %835 = vst.msk [vmem:[#allocation2 + $0x90] sm:$0xff] %vm825, %v748
    %836 = vst.msk [vmem:[#allocation2 + $0xa0] sm:$0xff] %vm825, %v750
    %837 = vst.msk [vmem:[#allocation2 + $0xb0] sm:$0xff] %vm825, %v752
    %838 = vst.msk [vmem:[#allocation2 + $0xc0] sm:$0xff] %vm825, %v754
    %839 = vst.msk [vmem:[#allocation2 + $0xd0] sm:$0xff] %vm825, %v756
    %840 = vst.msk [vmem:[#allocation2 + $0xe0] sm:$0xff] %vm825, %v758
    %841 = vst.msk [vmem:[#allocation2 + $0xf0] sm:$0xff] %vm825, %v760
    %842 = vst.msk [vmem:[#allocation2 + $0x100] sm:$0xff] %vm825, %v762
    %843 = vst.msk [vmem:[#allocation2 + $0x110] sm:$0xff] %vm825, %v764
    %844 = vst.msk [vmem:[#allocation2 + $0x120] sm:$0xff] %vm825, %v766
    %845 = vst.msk [vmem:[#allocation2 + $0x130] sm:$0xff] %vm825, %v768
    %846 = vst.msk [vmem:[#allocation2 + $0x140] sm:$0xff] %vm825, %v770
    %847 = vst.msk [vmem:[#allocation2 + $0x150] sm:$0xff] %vm825, %v772
    %848 = vst.msk [vmem:[#allocation2 + $0x160] sm:$0xff] %vm825, %v774
    %849 = vst.msk [vmem:[#allocation2 + $0x170] sm:$0xff] %vm825, %v776
    %850 = vst.msk [vmem:[#allocation2 + $0x180] sm:$0xff] %vm825, %v778
    %851 = vst.msk [vmem:[#allocation2 + $0x190] sm:$0xff] %vm825, %v780
    %852 = vst.msk [vmem:[#allocation2 + $0x1a0] sm:$0xff] %vm825, %v782
    %853 = vst.msk [vmem:[#allocation2 + $0x1b0] sm:$0xff] %vm825, %v784
    %854 = vst.msk [vmem:[#allocation2 + $0x1c0] sm:$0xff] %vm825, %v786
    %855 = vst.msk [vmem:[#allocation2 + $0x1d0] sm:$0xff] %vm825, %v788
    %856 = vst.msk [vmem:[#allocation2 + $0x1e0] sm:$0xff] %vm825, %v790
    %857 = vst.msk [vmem:[#allocation2 + $0x1f0] sm:$0xff] %vm825, %v792
    %v858 = vld [vmem:[%s471 + $0x2] sm:$0xff]
    %v859 = vld [vmem:[%s471 + $0xa] sm:$0xff]
    %v860 = vld [vmem:[%s471 + $0x1a] sm:$0xff]
    %v861 = vld [vmem:[%s471 + $0x22] sm:$0xff]
    %v862 = vld [vmem:[%s471 + $0x32] sm:$0xff]
    %v863 = vld [vmem:[%s471 + $0x3a] sm:$0xff]
    %v864 = vld [vmem:[%s471 + $0x4a] sm:$0xff]
    %v865 = vld [vmem:[%s471 + $0x52] sm:$0xff]
    %v866 = vld [vmem:[%s471 + $0x62] sm:$0xff]
    %v867 = vld [vmem:[%s471 + $0x6a] sm:$0xff]
    %v868 = vld [vmem:[%s471 + $0x7a] sm:$0xff]
    %v869 = vld [vmem:[%s471 + $0x82] sm:$0xff]
    %v870 = vld [vmem:[%s471 + $0x92] sm:$0xff]
    %v871 = vld [vmem:[%s471 + $0x9a] sm:$0xff]
    %v872 = vld [vmem:[%s471 + $0xaa] sm:$0xff]
    %v873 = vld [vmem:[%s471 + $0xb2] sm:$0xff]
    %v874 = vld [vmem:[%s471 + $0xc2] sm:$0xff]
    %v875 = vld [vmem:[%s471 + $0xca] sm:$0xff]
    %v876 = vld [vmem:[%s471 + $0xda] sm:$0xff]
    %v877 = vld [vmem:[%s471 + $0xe2] sm:$0xff]
    %v878 = vld [vmem:[%s471 + $0xf2] sm:$0xff]
    %v879 = vld [vmem:[%s471 + $0xfa] sm:$0xff]
    %v880 = vld [vmem:[%s471 + $0x10a] sm:$0xff]
    %v881 = vld [vmem:[%s471 + $0x112] sm:$0xff]
    %v882 = vld [vmem:[%s471 + $0x122] sm:$0xff]
    %v883 = vld [vmem:[%s471 + $0x12a] sm:$0xff]
    %v884 = vld [vmem:[%s471 + $0x13a] sm:$0xff]
    %v885 = vld [vmem:[%s471 + $0x142] sm:$0xff]
    %v886 = vld [vmem:[%s471 + $0x152] sm:$0xff]
    %v887 = vld [vmem:[%s471 + $0x15a] sm:$0xff]
    %v888 = vld [vmem:[%s471 + $0x16a] sm:$0xff]
    %v889 = vld [vmem:[%s471 + $0x172] sm:$0xff]
    %922 = vrot.lane.b32.xlu0 %v858, 80
    %v923 = vpop.permute.xlu0 %922
    %924 = vrot.lane.b32.xlu0 %v859, 80
    %v925 = vpop.permute.xlu0 %924
    %926 = vrot.lane.b32.xlu0 %v860, 80
    %v927 = vpop.permute.xlu0 %926
    %928 = vrot.lane.b32.xlu0 %v861, 80
    %v929 = vpop.permute.xlu0 %928
    %930 = vrot.lane.b32.xlu0 %v862, 80
    %v931 = vpop.permute.xlu0 %930
    %932 = vrot.lane.b32.xlu0 %v863, 80
    %v933 = vpop.permute.xlu0 %932
    %934 = vrot.lane.b32.xlu0 %v864, 80
    %v935 = vpop.permute.xlu0 %934
    %936 = vrot.lane.b32.xlu0 %v865, 80
    %v937 = vpop.permute.xlu0 %936
    %938 = vrot.lane.b32.xlu0 %v866, 80
    %v939 = vpop.permute.xlu0 %938
    %940 = vrot.lane.b32.xlu0 %v867, 80
    %v941 = vpop.permute.xlu0 %940
    %942 = vrot.lane.b32.xlu0 %v868, 80
    %v943 = vpop.permute.xlu0 %942
    %944 = vrot.lane.b32.xlu0 %v869, 80
    %v945 = vpop.permute.xlu0 %944
    %946 = vrot.lane.b32.xlu0 %v870, 80
    %v947 = vpop.permute.xlu0 %946
    %948 = vrot.lane.b32.xlu0 %v871, 80
    %v949 = vpop.permute.xlu0 %948
    %950 = vrot.lane.b32.xlu0 %v872, 80
    %v951 = vpop.permute.xlu0 %950
    %952 = vrot.lane.b32.xlu0 %v873, 80
    %v953 = vpop.permute.xlu0 %952
    %954 = vrot.lane.b32.xlu0 %v874, 80
    %v955 = vpop.permute.xlu0 %954
    %956 = vrot.lane.b32.xlu0 %v875, 80
    %v957 = vpop.permute.xlu0 %956
    %958 = vrot.lane.b32.xlu0 %v876, 80
    %v959 = vpop.permute.xlu0 %958
    %960 = vrot.lane.b32.xlu0 %v877, 80
    %v961 = vpop.permute.xlu0 %960
    %962 = vrot.lane.b32.xlu0 %v878, 80
    %v963 = vpop.permute.xlu0 %962
    %964 = vrot.lane.b32.xlu0 %v879, 80
    %v965 = vpop.permute.xlu0 %964
    %966 = vrot.lane.b32.xlu0 %v880, 80
    %v967 = vpop.permute.xlu0 %966
    %968 = vrot.lane.b32.xlu0 %v881, 80
    %v969 = vpop.permute.xlu0 %968
    %970 = vrot.lane.b32.xlu0 %v882, 80
    %v971 = vpop.permute.xlu0 %970
    %972 = vrot.lane.b32.xlu0 %v883, 80
    %v973 = vpop.permute.xlu0 %972
    %974 = vrot.lane.b32.xlu0 %v884, 80
    %v975 = vpop.permute.xlu0 %974
    %976 = vrot.lane.b32.xlu0 %v885, 80
    %v977 = vpop.permute.xlu0 %976
    %978 = vrot.lane.b32.xlu0 %v886, 80
    %v979 = vpop.permute.xlu0 %978
    %980 = vrot.lane.b32.xlu0 %v887, 80
    %v981 = vpop.permute.xlu0 %980
    %982 = vrot.lane.b32.xlu0 %v888, 80
    %v983 = vpop.permute.xlu0 %982
    %984 = vrot.lane.b32.xlu0 %v889, 80
    %v985 = vpop.permute.xlu0 %984
    %vm1018 = vcmask 786048
    %1019 = vst.msk [vmem:[#allocation2] sm:$0xff] %vm1018, %v923
    %1020 = vst.msk [vmem:[#allocation2 + $0x10] sm:$0xff] %vm1018, %v925
    %1021 = vst.msk [vmem:[#allocation2 + $0x20] sm:$0xff] %vm1018, %v927
    %1022 = vst.msk [vmem:[#allocation2 + $0x30] sm:$0xff] %vm1018, %v929
    %1023 = vst.msk [vmem:[#allocation2 + $0x40] sm:$0xff] %vm1018, %v931
    %1024 = vst.msk [vmem:[#allocation2 + $0x50] sm:$0xff] %vm1018, %v933
    %1025 = vst.msk [vmem:[#allocation2 + $0x60] sm:$0xff] %vm1018, %v935
    %1026 = vst.msk [vmem:[#allocation2 + $0x70] sm:$0xff] %vm1018, %v937
    %1027 = vst.msk [vmem:[#allocation2 + $0x80] sm:$0xff] %vm1018, %v939
    %1028 = vst.msk [vmem:[#allocation2 + $0x90] sm:$0xff] %vm1018, %v941
    %1029 = vst.msk [vmem:[#allocation2 + $0xa0] sm:$0xff] %vm1018, %v943
    %1030 = vst.msk [vmem:[#allocation2 + $0xb0] sm:$0xff] %vm1018, %v945
    %1031 = vst.msk [vmem:[#allocation2 + $0xc0] sm:$0xff] %vm1018, %v947
    %1032 = vst.msk [vmem:[#allocation2 + $0xd0] sm:$0xff] %vm1018, %v949
    %1033 = vst.msk [vmem:[#allocation2 + $0xe0] sm:$0xff] %vm1018, %v951
    %1034 = vst.msk [vmem:[#allocation2 + $0xf0] sm:$0xff] %vm1018, %v953
    %1035 = vst.msk [vmem:[#allocation2 + $0x100] sm:$0xff] %vm1018, %v955
    %1036 = vst.msk [vmem:[#allocation2 + $0x110] sm:$0xff] %vm1018, %v957
    %1037 = vst.msk [vmem:[#allocation2 + $0x120] sm:$0xff] %vm1018, %v959
    %1038 = vst.msk [vmem:[#allocation2 + $0x130] sm:$0xff] %vm1018, %v961
    %1039 = vst.msk [vmem:[#allocation2 + $0x140] sm:$0xff] %vm1018, %v963
    %1040 = vst.msk [vmem:[#allocation2 + $0x150] sm:$0xff] %vm1018, %v965
    %1041 = vst.msk [vmem:[#allocation2 + $0x160] sm:$0xff] %vm1018, %v967
    %1042 = vst.msk [vmem:[#allocation2 + $0x170] sm:$0xff] %vm1018, %v969
    %1043 = vst.msk [vmem:[#allocation2 + $0x180] sm:$0xff] %vm1018, %v971
    %1044 = vst.msk [vmem:[#allocation2 + $0x190] sm:$0xff] %vm1018, %v973
    %1045 = vst.msk [vmem:[#allocation2 + $0x1a0] sm:$0xff] %vm1018, %v975
    %1046 = vst.msk [vmem:[#allocation2 + $0x1b0] sm:$0xff] %vm1018, %v977
    %1047 = vst.msk [vmem:[#allocation2 + $0x1c0] sm:$0xff] %vm1018, %v979
    %1048 = vst.msk [vmem:[#allocation2 + $0x1d0] sm:$0xff] %vm1018, %v981
    %1049 = vst.msk [vmem:[#allocation2 + $0x1e0] sm:$0xff] %vm1018, %v983
    %1050 = vst.msk [vmem:[#allocation2 + $0x1f0] sm:$0xff] %vm1018, %v985
    %s1051 = sadd.s32 %s15, 2
    %s1052 = smul.u32 %s1051, 24
    %s1053 = scalar_lea.vmem %s0, %s1052
    %v1054 = vld [vmem:[%s1053] sm:$0xff]
    %v1055 = vld [vmem:[%s1053 + $0x8] sm:$0xff]
    %v1056 = vld [vmem:[%s1053 + $0x18] sm:$0xff]
    %v1057 = vld [vmem:[%s1053 + $0x20] sm:$0xff]
    %v1058 = vld [vmem:[%s1053 + $0x30] sm:$0xff]
    %v1059 = vld [vmem:[%s1053 + $0x38] sm:$0xff]
    %v1060 = vld [vmem:[%s1053 + $0x48] sm:$0xff]
    %v1061 = vld [vmem:[%s1053 + $0x50] sm:$0xff]
    %v1062 = vld [vmem:[%s1053 + $0x60] sm:$0xff]
    %v1063 = vld [vmem:[%s1053 + $0x68] sm:$0xff]
    %v1064 = vld [vmem:[%s1053 + $0x78] sm:$0xff]
    %v1065 = vld [vmem:[%s1053 + $0x80] sm:$0xff]
    %v1066 = vld [vmem:[%s1053 + $0x90] sm:$0xff]
    %v1067 = vld [vmem:[%s1053 + $0x98] sm:$0xff]
    %v1068 = vld [vmem:[%s1053 + $0xa8] sm:$0xff]
    %v1069 = vld [vmem:[%s1053 + $0xb0] sm:$0xff]
    %v1070 = vld [vmem:[%s1053 + $0xc0] sm:$0xff]
    %v1071 = vld [vmem:[%s1053 + $0xc8] sm:$0xff]
    %v1072 = vld [vmem:[%s1053 + $0xd8] sm:$0xff]
    %v1073 = vld [vmem:[%s1053 + $0xe0] sm:$0xff]
    %v1074 = vld [vmem:[%s1053 + $0xf0] sm:$0xff]
    %v1075 = vld [vmem:[%s1053 + $0xf8] sm:$0xff]
    %v1076 = vld [vmem:[%s1053 + $0x108] sm:$0xff]
    %v1077 = vld [vmem:[%s1053 + $0x110] sm:$0xff]
    %v1078 = vld [vmem:[%s1053 + $0x120] sm:$0xff]
    %v1079 = vld [vmem:[%s1053 + $0x128] sm:$0xff]
    %v1080 = vld [vmem:[%s1053 + $0x138] sm:$0xff]
    %v1081 = vld [vmem:[%s1053 + $0x140] sm:$0xff]
    %v1082 = vld [vmem:[%s1053 + $0x150] sm:$0xff]
    %v1083 = vld [vmem:[%s1053 + $0x158] sm:$0xff]
    %v1084 = vld [vmem:[%s1053 + $0x168] sm:$0xff]
    %v1085 = vld [vmem:[%s1053 + $0x170] sm:$0xff]
    %1118 = vrot.lane.b32.xlu0 %v1054, 96
    %v1119 = vpop.permute.xlu0 %1118
    %1120 = vrot.lane.b32.xlu0 %v1055, 96
    %v1121 = vpop.permute.xlu0 %1120
    %1122 = vrot.lane.b32.xlu0 %v1056, 96
    %v1123 = vpop.permute.xlu0 %1122
    %1124 = vrot.lane.b32.xlu0 %v1057, 96
    %v1125 = vpop.permute.xlu0 %1124
    %1126 = vrot.lane.b32.xlu0 %v1058, 96
    %v1127 = vpop.permute.xlu0 %1126
    %1128 = vrot.lane.b32.xlu0 %v1059, 96
    %v1129 = vpop.permute.xlu0 %1128
    %1130 = vrot.lane.b32.xlu0 %v1060, 96
    %v1131 = vpop.permute.xlu0 %1130
    %1132 = vrot.lane.b32.xlu0 %v1061, 96
    %v1133 = vpop.permute.xlu0 %1132
    %1134 = vrot.lane.b32.xlu0 %v1062, 96
    %v1135 = vpop.permute.xlu0 %1134
    %1136 = vrot.lane.b32.xlu0 %v1063, 96
    %v1137 = vpop.permute.xlu0 %1136
    %1138 = vrot.lane.b32.xlu0 %v1064, 96
    %v1139 = vpop.permute.xlu0 %1138
    %1140 = vrot.lane.b32.xlu0 %v1065, 96
    %v1141 = vpop.permute.xlu0 %1140
    %1142 = vrot.lane.b32.xlu0 %v1066, 96
    %v1143 = vpop.permute.xlu0 %1142
    %1144 = vrot.lane.b32.xlu0 %v1067, 96
    %v1145 = vpop.permute.xlu0 %1144
    %1146 = vrot.lane.b32.xlu0 %v1068, 96
    %v1147 = vpop.permute.xlu0 %1146
    %1148 = vrot.lane.b32.xlu0 %v1069, 96
    %v1149 = vpop.permute.xlu0 %1148
    %1150 = vrot.lane.b32.xlu0 %v1070, 96
    %v1151 = vpop.permute.xlu0 %1150
    %1152 = vrot.lane.b32.xlu0 %v1071, 96
    %v1153 = vpop.permute.xlu0 %1152
    %1154 = vrot.lane.b32.xlu0 %v1072, 96
    %v1155 = vpop.permute.xlu0 %1154
    %1156 = vrot.lane.b32.xlu0 %v1073, 96
    %v1157 = vpop.permute.xlu0 %1156
    %1158 = vrot.lane.b32.xlu0 %v1074, 96
    %v1159 = vpop.permute.xlu0 %1158
    %1160 = vrot.lane.b32.xlu0 %v1075, 96
    %v1161 = vpop.permute.xlu0 %1160
    %1162 = vrot.lane.b32.xlu0 %v1076, 96
    %v1163 = vpop.permute.xlu0 %1162
    %1164 = vrot.lane.b32.xlu0 %v1077, 96
    %v1165 = vpop.permute.xlu0 %1164
    %1166 = vrot.lane.b32.xlu0 %v1078, 96
    %v1167 = vpop.permute.xlu0 %1166
    %1168 = vrot.lane.b32.xlu0 %v1079, 96
    %v1169 = vpop.permute.xlu0 %1168
    %1170 = vrot.lane.b32.xlu0 %v1080, 96
    %v1171 = vpop.permute.xlu0 %1170
    %1172 = vrot.lane.b32.xlu0 %v1081, 96
    %v1173 = vpop.permute.xlu0 %1172
    %1174 = vrot.lane.b32.xlu0 %v1082, 96
    %v1175 = vpop.permute.xlu0 %1174
    %1176 = vrot.lane.b32.xlu0 %v1083, 96
    %v1177 = vpop.permute.xlu0 %1176
    %1178 = vrot.lane.b32.xlu0 %v1084, 96
    %v1179 = vpop.permute.xlu0 %1178
    %1180 = vrot.lane.b32.xlu0 %v1085, 96
    %v1181 = vpop.permute.xlu0 %1180
    %vm1214 = vcmask 917248
    %1215 = vst.msk [vmem:[#allocation2] sm:$0xff] %vm1214, %v1119
    %1216 = vst.msk [vmem:[#allocation2 + $0x10] sm:$0xff] %vm1214, %v1121
    %1217 = vst.msk [vmem:[#allocation2 + $0x20] sm:$0xff] %vm1214, %v1123
    %1218 = vst.msk [vmem:[#allocation2 + $0x30] sm:$0xff] %vm1214, %v1125
    %1219 = vst.msk [vmem:[#allocation2 + $0x40] sm:$0xff] %vm1214, %v1127
    %1220 = vst.msk [vmem:[#allocation2 + $0x50] sm:$0xff] %vm1214, %v1129
    %1221 = vst.msk [vmem:[#allocation2 + $0x60] sm:$0xff] %vm1214, %v1131
    %1222 = vst.msk [vmem:[#allocation2 + $0x70] sm:$0xff] %vm1214, %v1133
    %1223 = vst.msk [vmem:[#allocation2 + $0x80] sm:$0xff] %vm1214, %v1135
    %1224 = vst.msk [vmem:[#allocation2 + $0x90] sm:$0xff] %vm1214, %v1137
    %1225 = vst.msk [vmem:[#allocation2 + $0xa0] sm:$0xff] %vm1214, %v1139
    %1226 = vst.msk [vmem:[#allocation2 + $0xb0] sm:$0xff] %vm1214, %v1141
    %1227 = vst.msk [vmem:[#allocation2 + $0xc0] sm:$0xff] %vm1214, %v1143
    %1228 = vst.msk [vmem:[#allocation2 + $0xd0] sm:$0xff] %vm1214, %v1145
    %1229 = vst.msk [vmem:[#allocation2 + $0xe0] sm:$0xff] %vm1214, %v1147
    %1230 = vst.msk [vmem:[#allocation2 + $0xf0] sm:$0xff] %vm1214, %v1149
    %1231 = vst.msk [vmem:[#allocation2 + $0x100] sm:$0xff] %vm1214, %v1151
    %1232 = vst.msk [vmem:[#allocation2 + $0x110] sm:$0xff] %vm1214, %v1153
    %1233 = vst.msk [vmem:[#allocation2 + $0x120] sm:$0xff] %vm1214, %v1155
    %1234 = vst.msk [vmem:[#allocation2 + $0x130] sm:$0xff] %vm1214, %v1157
    %1235 = vst.msk [vmem:[#allocation2 + $0x140] sm:$0xff] %vm1214, %v1159
    %1236 = vst.msk [vmem:[#allocation2 + $0x150] sm:$0xff] %vm1214, %v1161
    %1237 = vst.msk [vmem:[#allocation2 + $0x160] sm:$0xff] %vm1214, %v1163
    %1238 = vst.msk [vmem:[#allocation2 + $0x170] sm:$0xff] %vm1214, %v1165
    %1239 = vst.msk [vmem:[#allocation2 + $0x180] sm:$0xff] %vm1214, %v1167
    %1240 = vst.msk [vmem:[#allocation2 + $0x190] sm:$0xff] %vm1214, %v1169
    %1241 = vst.msk [vmem:[#allocation2 + $0x1a0] sm:$0xff] %vm1214, %v1171
    %1242 = vst.msk [vmem:[#allocation2 + $0x1b0] sm:$0xff] %vm1214, %v1173
    %1243 = vst.msk [vmem:[#allocation2 + $0x1c0] sm:$0xff] %vm1214, %v1175
    %1244 = vst.msk [vmem:[#allocation2 + $0x1d0] sm:$0xff] %vm1214, %v1177
    %1245 = vst.msk [vmem:[#allocation2 + $0x1e0] sm:$0xff] %vm1214, %v1179
    %1246 = vst.msk [vmem:[#allocation2 + $0x1f0] sm:$0xff] %vm1214, %v1181
    %v1247 = vld [vmem:[%s1053 + $0x1] sm:$0xff]
    %v1248 = vld [vmem:[%s1053 + $0x9] sm:$0xff]
    %v1249 = vld [vmem:[%s1053 + $0x19] sm:$0xff]
    %v1250 = vld [vmem:[%s1053 + $0x21] sm:$0xff]
    %v1251 = vld [vmem:[%s1053 + $0x31] sm:$0xff]
    %v1252 = vld [vmem:[%s1053 + $0x39] sm:$0xff]
    %v1253 = vld [vmem:[%s1053 + $0x49] sm:$0xff]
    %v1254 = vld [vmem:[%s1053 + $0x51] sm:$0xff]
    %v1255 = vld [vmem:[%s1053 + $0x61] sm:$0xff]
    %v1256 = vld [vmem:[%s1053 + $0x69] sm:$0xff]
    %v1257 = vld [vmem:[%s1053 + $0x79] sm:$0xff]
    %v1258 = vld [vmem:[%s1053 + $0x81] sm:$0xff]
    %v1259 = vld [vmem:[%s1053 + $0x91] sm:$0xff]
    %v1260 = vld [vmem:[%s1053 + $0x99] sm:$0xff]
    %v1261 = vld [vmem:[%s1053 + $0xa9] sm:$0xff]
    %v1262 = vld [vmem:[%s1053 + $0xb1] sm:$0xff]
    %v1263 = vld [vmem:[%s1053 + $0xc1] sm:$0xff]
    %v1264 = vld [vmem:[%s1053 + $0xc9] sm:$0xff]
    %v1265 = vld [vmem:[%s1053 + $0xd9] sm:$0xff]
    %v1266 = vld [vmem:[%s1053 + $0xe1] sm:$0xff]
    %v1267 = vld [vmem:[%s1053 + $0xf1] sm:$0xff]
    %v1268 = vld [vmem:[%s1053 + $0xf9] sm:$0xff]
    %v1269 = vld [vmem:[%s1053 + $0x109] sm:$0xff]
    %v1270 = vld [vmem:[%s1053 + $0x111] sm:$0xff]
    %v1271 = vld [vmem:[%s1053 + $0x121] sm:$0xff]
    %v1272 = vld [vmem:[%s1053 + $0x129] sm:$0xff]
    %v1273 = vld [vmem:[%s1053 + $0x139] sm:$0xff]
    %v1274 = vld [vmem:[%s1053 + $0x141] sm:$0xff]
    %v1275 = vld [vmem:[%s1053 + $0x151] sm:$0xff]
    %v1276 = vld [vmem:[%s1053 + $0x159] sm:$0xff]
    %v1277 = vld [vmem:[%s1053 + $0x169] sm:$0xff]
    %v1278 = vld [vmem:[%s1053 + $0x171] sm:$0xff]
    %1311 = vrot.lane.b32.xlu0 %v1247, 112
    %v1312 = vpop.permute.xlu0 %1311
    %1313 = vrot.lane.b32.xlu0 %v1248, 112
    %v1314 = vpop.permute.xlu0 %1313
    %1315 = vrot.lane.b32.xlu0 %v1249, 112
    %v1316 = vpop.permute.xlu0 %1315
    %1317 = vrot.lane.b32.xlu0 %v1250, 112
    %v1318 = vpop.permute.xlu0 %1317
    %1319 = vrot.lane.b32.xlu0 %v1251, 112
    %v1320 = vpop.permute.xlu0 %1319
    %1321 = vrot.lane.b32.xlu0 %v1252, 112
    %v1322 = vpop.permute.xlu0 %1321
    %1323 = vrot.lane.b32.xlu0 %v1253, 112
    %v1324 = vpop.permute.xlu0 %1323
    %1325 = vrot.lane.b32.xlu0 %v1254, 112
    %v1326 = vpop.permute.xlu0 %1325
    %1327 = vrot.lane.b32.xlu0 %v1255, 112
    %v1328 = vpop.permute.xlu0 %1327
    %1329 = vrot.lane.b32.xlu0 %v1256, 112
    %v1330 = vpop.permute.xlu0 %1329
    %1331 = vrot.lane.b32.xlu0 %v1257, 112
    %v1332 = vpop.permute.xlu0 %1331
    %1333 = vrot.lane.b32.xlu0 %v1258, 112
    %v1334 = vpop.permute.xlu0 %1333
    %1335 = vrot.lane.b32.xlu0 %v1259, 112
    %v1336 = vpop.permute.xlu0 %1335
    %1337 = vrot.lane.b32.xlu0 %v1260, 112
    %v1338 = vpop.permute.xlu0 %1337
    %1339 = vrot.lane.b32.xlu0 %v1261, 112
    %v1340 = vpop.permute.xlu0 %1339
    %1341 = vrot.lane.b32.xlu0 %v1262, 112
    %v1342 = vpop.permute.xlu0 %1341
    %1343 = vrot.lane.b32.xlu0 %v1263, 112
    %v1344 = vpop.permute.xlu0 %1343
    %1345 = vrot.lane.b32.xlu0 %v1264, 112
    %v1346 = vpop.permute.xlu0 %1345
    %1347 = vrot.lane.b32.xlu0 %v1265, 112
    %v1348 = vpop.permute.xlu0 %1347
    %1349 = vrot.lane.b32.xlu0 %v1266, 112
    %v1350 = vpop.permute.xlu0 %1349
    %1351 = vrot.lane.b32.xlu0 %v1267, 112
    %v1352 = vpop.permute.xlu0 %1351
    %1353 = vrot.lane.b32.xlu0 %v1268, 112
    %v1354 = vpop.permute.xlu0 %1353
    %1355 = vrot.lane.b32.xlu0 %v1269, 112
    %v1356 = vpop.permute.xlu0 %1355
    %1357 = vrot.lane.b32.xlu0 %v1270, 112
    %v1358 = vpop.permute.xlu0 %1357
    %1359 = vrot.lane.b32.xlu0 %v1271, 112
    %v1360 = vpop.permute.xlu0 %1359
    %1361 = vrot.lane.b32.xlu0 %v1272, 112
    %v1362 = vpop.permute.xlu0 %1361
    %1363 = vrot.lane.b32.xlu0 %v1273, 112
    %v1364 = vpop.permute.xlu0 %1363
    %1365 = vrot.lane.b32.xlu0 %v1274, 112
    %v1366 = vpop.permute.xlu0 %1365
    %1367 = vrot.lane.b32.xlu0 %v1275, 112
    %v1368 = vpop.permute.xlu0 %1367
    %1369 = vrot.lane.b32.xlu0 %v1276, 112
    %v1370 = vpop.permute.xlu0 %1369
    %1371 = vrot.lane.b32.xlu0 %v1277, 112
    %v1372 = vpop.permute.xlu0 %1371
    %1373 = vrot.lane.b32.xlu0 %v1278, 112
    %v1374 = vpop.permute.xlu0 %1373
    %vm1407 = vcmask 1048448
    %1408 = vst.msk [vmem:[#allocation2] sm:$0xff] %vm1407, %v1312
    %1409 = vst.msk [vmem:[#allocation2 + $0x10] sm:$0xff] %vm1407, %v1314
    %1410 = vst.msk [vmem:[#allocation2 + $0x20] sm:$0xff] %vm1407, %v1316
    %1411 = vst.msk [vmem:[#allocation2 + $0x30] sm:$0xff] %vm1407, %v1318
    %1412 = vst.msk [vmem:[#allocation2 + $0x40] sm:$0xff] %vm1407, %v1320
    %1413 = vst.msk [vmem:[#allocation2 + $0x50] sm:$0xff] %vm1407, %v1322
    %1414 = vst.msk [vmem:[#allocation2 + $0x60] sm:$0xff] %vm1407, %v1324
    %1415 = vst.msk [vmem:[#allocation2 + $0x70] sm:$0xff] %vm1407, %v1326
    %1416 = vst.msk [vmem:[#allocation2 + $0x80] sm:$0xff] %vm1407, %v1328
    %1417 = vst.msk [vmem:[#allocation2 + $0x90] sm:$0xff] %vm1407, %v1330
    %1418 = vst.msk [vmem:[#allocation2 + $0xa0] sm:$0xff] %vm1407, %v1332
    %1419 = vst.msk [vmem:[#allocation2 + $0xb0] sm:$0xff] %vm1407, %v1334
    %1420 = vst.msk [vmem:[#allocation2 + $0xc0] sm:$0xff] %vm1407, %v1336
    %1421 = vst.msk [vmem:[#allocation2 + $0xd0] sm:$0xff] %vm1407, %v1338
    %1422 = vst.msk [vmem:[#allocation2 + $0xe0] sm:$0xff] %vm1407, %v1340
    %1423 = vst.msk [vmem:[#allocation2 + $0xf0] sm:$0xff] %vm1407, %v1342
    %1424 = vst.msk [vmem:[#allocation2 + $0x100] sm:$0xff] %vm1407, %v1344
    %1425 = vst.msk [vmem:[#allocation2 + $0x110] sm:$0xff] %vm1407, %v1346
    %1426 = vst.msk [vmem:[#allocation2 + $0x120] sm:$0xff] %vm1407, %v1348
    %1427 = vst.msk [vmem:[#allocation2 + $0x130] sm:$0xff] %vm1407, %v1350
    %1428 = vst.msk [vmem:[#allocation2 + $0x140] sm:$0xff] %vm1407, %v1352
    %1429 = vst.msk [vmem:[#allocation2 + $0x150] sm:$0xff] %vm1407, %v1354
    %1430 = vst.msk [vmem:[#allocation2 + $0x160] sm:$0xff] %vm1407, %v1356
    %1431 = vst.msk [vmem:[#allocation2 + $0x170] sm:$0xff] %vm1407, %v1358
    %1432 = vst.msk [vmem:[#allocation2 + $0x180] sm:$0xff] %vm1407, %v1360
    %1433 = vst.msk [vmem:[#allocation2 + $0x190] sm:$0xff] %vm1407, %v1362
    %1434 = vst.msk [vmem:[#allocation2 + $0x1a0] sm:$0xff] %vm1407, %v1364
    %1435 = vst.msk [vmem:[#allocation2 + $0x1b0] sm:$0xff] %vm1407, %v1366
    %1436 = vst.msk [vmem:[#allocation2 + $0x1c0] sm:$0xff] %vm1407, %v1368
    %1437 = vst.msk [vmem:[#allocation2 + $0x1d0] sm:$0xff] %vm1407, %v1370
    %1438 = vst.msk [vmem:[#allocation2 + $0x1e0] sm:$0xff] %vm1407, %v1372
    %1439 = vst.msk [vmem:[#allocation2 + $0x1f0] sm:$0xff] %vm1407, %v1374
    %v1440 = vld [vmem:[%s1053 + $0x2] sm:$0xff]
    %v1441 = vld [vmem:[%s1053 + $0xa] sm:$0xff]
    %v1442 = vld [vmem:[%s1053 + $0x1a] sm:$0xff]
    %v1443 = vld [vmem:[%s1053 + $0x22] sm:$0xff]
    %v1444 = vld [vmem:[%s1053 + $0x32] sm:$0xff]
    %v1445 = vld [vmem:[%s1053 + $0x3a] sm:$0xff]
    %v1446 = vld [vmem:[%s1053 + $0x4a] sm:$0xff]
    %v1447 = vld [vmem:[%s1053 + $0x52] sm:$0xff]
    %v1448 = vld [vmem:[%s1053 + $0x62] sm:$0xff]
    %v1449 = vld [vmem:[%s1053 + $0x6a] sm:$0xff]
    %v1450 = vld [vmem:[%s1053 + $0x7a] sm:$0xff]
    %v1451 = vld [vmem:[%s1053 + $0x82] sm:$0xff]
    %v1452 = vld [vmem:[%s1053 + $0x92] sm:$0xff]
    %v1453 = vld [vmem:[%s1053 + $0x9a] sm:$0xff]
    %v1454 = vld [vmem:[%s1053 + $0xaa] sm:$0xff]
    %v1455 = vld [vmem:[%s1053 + $0xb2] sm:$0xff]
    %v1456 = vld [vmem:[%s1053 + $0xc2] sm:$0xff]
    %v1457 = vld [vmem:[%s1053 + $0xca] sm:$0xff]
    %v1458 = vld [vmem:[%s1053 + $0xda] sm:$0xff]
    %v1459 = vld [vmem:[%s1053 + $0xe2] sm:$0xff]
    %v1460 = vld [vmem:[%s1053 + $0xf2] sm:$0xff]
    %v1461 = vld [vmem:[%s1053 + $0xfa] sm:$0xff]
    %v1462 = vld [vmem:[%s1053 + $0x10a] sm:$0xff]
    %v1463 = vld [vmem:[%s1053 + $0x112] sm:$0xff]
    %v1464 = vld [vmem:[%s1053 + $0x122] sm:$0xff]
    %v1465 = vld [vmem:[%s1053 + $0x12a] sm:$0xff]
    %v1466 = vld [vmem:[%s1053 + $0x13a] sm:$0xff]
    %v1467 = vld [vmem:[%s1053 + $0x142] sm:$0xff]
    %v1468 = vld [vmem:[%s1053 + $0x152] sm:$0xff]
    %v1469 = vld [vmem:[%s1053 + $0x15a] sm:$0xff]
    %v1470 = vld [vmem:[%s1053 + $0x16a] sm:$0xff]
    %v1471 = vld [vmem:[%s1053 + $0x172] sm:$0xff]
    %1472 = vst.msk [vmem:[#allocation2 + $0x8] sm:$0xff] %vm50, %v1440
    %1473 = vst.msk [vmem:[#allocation2 + $0x18] sm:$0xff] %vm50, %v1441
    %1474 = vst.msk [vmem:[#allocation2 + $0x28] sm:$0xff] %vm50, %v1442
    %1475 = vst.msk [vmem:[#allocation2 + $0x38] sm:$0xff] %vm50, %v1443
    %1476 = vst.msk [vmem:[#allocation2 + $0x48] sm:$0xff] %vm50, %v1444
    %1477 = vst.msk [vmem:[#allocation2 + $0x58] sm:$0xff] %vm50, %v1445
    %1478 = vst.msk [vmem:[#allocation2 + $0x68] sm:$0xff] %vm50, %v1446
    %1479 = vst.msk [vmem:[#allocation2 + $0x78] sm:$0xff] %vm50, %v1447
    %1480 = vst.msk [vmem:[#allocation2 + $0x88] sm:$0xff] %vm50, %v1448
    %1481 = vst.msk [vmem:[#allocation2 + $0x98] sm:$0xff] %vm50, %v1449
    %1482 = vst.msk [vmem:[#allocation2 + $0xa8] sm:$0xff] %vm50, %v1450
    %1483 = vst.msk [vmem:[#allocation2 + $0xb8] sm:$0xff] %vm50, %v1451
    %1484 = vst.msk [vmem:[#allocation2 + $0xc8] sm:$0xff] %vm50, %v1452
    %1485 = vst.msk [vmem:[#allocation2 + $0xd8] sm:$0xff] %vm50, %v1453
    %1486 = vst.msk [vmem:[#allocation2 + $0xe8] sm:$0xff] %vm50, %v1454
    %1487 = vst.msk [vmem:[#allocation2 + $0xf8] sm:$0xff] %vm50, %v1455
    %1488 = vst.msk [vmem:[#allocation2 + $0x108] sm:$0xff] %vm50, %v1456
    %1489 = vst.msk [vmem:[#allocation2 + $0x118] sm:$0xff] %vm50, %v1457
    %1490 = vst.msk [vmem:[#allocation2 + $0x128] sm:$0xff] %vm50, %v1458
    %1491 = vst.msk [vmem:[#allocation2 + $0x138] sm:$0xff] %vm50, %v1459
    %1492 = vst.msk [vmem:[#allocation2 + $0x148] sm:$0xff] %vm50, %v1460
    %1493 = vst.msk [vmem:[#allocation2 + $0x158] sm:$0xff] %vm50, %v1461
    %1494 = vst.msk [vmem:[#allocation2 + $0x168] sm:$0xff] %vm50, %v1462
    %1495 = vst.msk [vmem:[#allocation2 + $0x178] sm:$0xff] %vm50, %v1463
    %1496 = vst.msk [vmem:[#allocation2 + $0x188] sm:$0xff] %vm50, %v1464
    %1497 = vst.msk [vmem:[#allocation2 + $0x198] sm:$0xff] %vm50, %v1465
    %1498 = vst.msk [vmem:[#allocation2 + $0x1a8] sm:$0xff] %vm50, %v1466
    %1499 = vst.msk [vmem:[#allocation2 + $0x1b8] sm:$0xff] %vm50, %v1467
    %1500 = vst.msk [vmem:[#allocation2 + $0x1c8] sm:$0xff] %vm50, %v1468
    %1501 = vst.msk [vmem:[#allocation2 + $0x1d8] sm:$0xff] %vm50, %v1469
    %1502 = vst.msk [vmem:[#allocation2 + $0x1e8] sm:$0xff] %vm50, %v1470
    %1503 = vst.msk [vmem:[#allocation2 + $0x1f8] sm:$0xff] %vm50, %v1471
    %v1504 = vld [vmem:[#allocation2] sm:$0xff]
    %v1505 = vld [vmem:[#allocation2 + $0x8] sm:$0xff]
    %v1506 = vld [vmem:[#allocation2 + $0x10] sm:$0xff]
    %v1507 = vld [vmem:[#allocation2 + $0x18] sm:$0xff]
    %v1508 = vld [vmem:[#allocation2 + $0x20] sm:$0xff]
    %v1509 = vld [vmem:[#allocation2 + $0x28] sm:$0xff]
    %v1510 = vld [vmem:[#allocation2 + $0x30] sm:$0xff]
    %v1511 = vld [vmem:[#allocation2 + $0x38] sm:$0xff]
    %v1512 = vld [vmem:[#allocation2 + $0x40] sm:$0xff]
    %v1513 = vld [vmem:[#allocation2 + $0x48] sm:$0xff]
    %v1514 = vld [vmem:[#allocation2 + $0x50] sm:$0xff]
    %v1515 = vld [vmem:[#allocation2 + $0x58] sm:$0xff]
    %v1516 = vld [vmem:[#allocation2 + $0x60] sm:$0xff]
    %v1517 = vld [vmem:[#allocation2 + $0x68] sm:$0xff]
    %v1518 = vld [vmem:[#allocation2 + $0x70] sm:$0xff]
    %v1519 = vld [vmem:[#allocation2 + $0x78] sm:$0xff]
    %v1520 = vld [vmem:[#allocation2 + $0x80] sm:$0xff]
    %v1521 = vld [vmem:[#allocation2 + $0x88] sm:$0xff]
    %v1522 = vld [vmem:[#allocation2 + $0x90] sm:$0xff]
    %v1523 = vld [vmem:[#allocation2 + $0x98] sm:$0xff]
    %v1524 = vld [vmem:[#allocation2 + $0xa0] sm:$0xff]
    %v1525 = vld [vmem:[#allocation2 + $0xa8] sm:$0xff]
    %v1526 = vld [vmem:[#allocation2 + $0xb0] sm:$0xff]
    %v1527 = vld [vmem:[#allocation2 + $0xb8] sm:$0xff]
    %v1528 = vld [vmem:[#allocation2 + $0xc0] sm:$0xff]
    %v1529 = vld [vmem:[#allocation2 + $0xc8] sm:$0xff]
    %v1530 = vld [vmem:[#allocation2 + $0xd0] sm:$0xff]
    %v1531 = vld [vmem:[#allocation2 + $0xd8] sm:$0xff]
    %v1532 = vld [vmem:[#allocation2 + $0xe0] sm:$0xff]
    %v1533 = vld [vmem:[#allocation2 + $0xe8] sm:$0xff]
    %v1534 = vld [vmem:[#allocation2 + $0xf0] sm:$0xff]
    %v1535 = vld [vmem:[#allocation2 + $0xf8] sm:$0xff]
    %v1536 = vld [vmem:[#allocation2 + $0x100] sm:$0xff]
    %v1537 = vld [vmem:[#allocation2 + $0x108] sm:$0xff]
    %v1538 = vld [vmem:[#allocation2 + $0x110] sm:$0xff]
    %v1539 = vld [vmem:[#allocation2 + $0x118] sm:$0xff]
    %v1540 = vld [vmem:[#allocation2 + $0x120] sm:$0xff]
    %v1541 = vld [vmem:[#allocation2 + $0x128] sm:$0xff]
    %v1542 = vld [vmem:[#allocation2 + $0x130] sm:$0xff]
    %v1543 = vld [vmem:[#allocation2 + $0x138] sm:$0xff]
    %v1544 = vld [vmem:[#allocation2 + $0x140] sm:$0xff]
    %v1545 = vld [vmem:[#allocation2 + $0x148] sm:$0xff]
    %v1546 = vld [vmem:[#allocation2 + $0x150] sm:$0xff]
    %v1547 = vld [vmem:[#allocation2 + $0x158] sm:$0xff]
    %v1548 = vld [vmem:[#allocation2 + $0x160] sm:$0xff]
    %v1549 = vld [vmem:[#allocation2 + $0x168] sm:$0xff]
    %v1550 = vld [vmem:[#allocation2 + $0x170] sm:$0xff]
    %v1551 = vld [vmem:[#allocation2 + $0x178] sm:$0xff]
    %v1552 = vld [vmem:[#allocation2 + $0x180] sm:$0xff]
    %v1553 = vld [vmem:[#allocation2 + $0x188] sm:$0xff]
    %v1554 = vld [vmem:[#allocation2 + $0x190] sm:$0xff]
    %v1555 = vld [vmem:[#allocation2 + $0x198] sm:$0xff]
    %v1556 = vld [vmem:[#allocation2 + $0x1a0] sm:$0xff]
    %v1557 = vld [vmem:[#allocation2 + $0x1a8] sm:$0xff]
    %v1558 = vld [vmem:[#allocation2 + $0x1b0] sm:$0xff]
    %v1559 = vld [vmem:[#allocation2 + $0x1b8] sm:$0xff]
    %v1560 = vld [vmem:[#allocation2 + $0x1c0] sm:$0xff]
    %v1561 = vld [vmem:[#allocation2 + $0x1c8] sm:$0xff]
    %v1562 = vld [vmem:[#allocation2 + $0x1d0] sm:$0xff]
    %v1563 = vld [vmem:[#allocation2 + $0x1d8] sm:$0xff]
    %v1564 = vld [vmem:[#allocation2 + $0x1e0] sm:$0xff]
    %v1565 = vld [vmem:[#allocation2 + $0x1e8] sm:$0xff]
    %v1566 = vld [vmem:[#allocation2 + $0x1f0] sm:$0xff]
    %v1567 = vld [vmem:[#allocation2 + $0x1f8] sm:$0xff]
    %v1568 = vld [vmem:[%s1] sm:$0xff]
    %v1569 = vld [vmem:[%s1 + $0x8] sm:$0xff]
    %v1570 = vld [vmem:[%s1 + $0x10] sm:$0xff]
    %v1571 = vld [vmem:[%s1 + $0x18] sm:$0xff]
    %v1572 = vld [vmem:[%s1 + $0x20] sm:$0xff]
    %v1573 = vld [vmem:[%s1 + $0x28] sm:$0xff]
    %v1574 = vld [vmem:[%s1 + $0x30] sm:$0xff]
    %v1575 = vld [vmem:[%s1 + $0x38] sm:$0xff]
    %v1576 = vld [vmem:[%s1 + $0x40] sm:$0xff]
    %v1577 = vld [vmem:[%s1 + $0x48] sm:$0xff]
    %v1578 = vld [vmem:[%s1 + $0x50] sm:$0xff]
    %v1579 = vld [vmem:[%s1 + $0x58] sm:$0xff]
    %v1580 = vld [vmem:[%s1 + $0x60] sm:$0xff]
    %v1581 = vld [vmem:[%s1 + $0x68] sm:$0xff]
    %v1582 = vld [vmem:[%s1 + $0x70] sm:$0xff]
    %v1583 = vld [vmem:[%s1 + $0x78] sm:$0xff]
    %v1584 = vld [vmem:[%s1 + $0x80] sm:$0xff]
    %v1585 = vld [vmem:[%s1 + $0x88] sm:$0xff]
    %v1586 = vld [vmem:[%s2] sm:$0x1]
    %v1588 = vlaneseq
    %v1589 = vshrl.u32 %v1588, 7
    %v1590 = vsub.s32 0, %v1589
    %v1591 = vrot.slane %v1586, %v1590
    %v1594 = vsel %vm50, %v1505, 0
    %v1597 = vsel %vm50, %v1507, 0
    %v1600 = vsel %vm50, %v1509, 0
    %v1603 = vsel %vm50, %v1511, 0
    %v1606 = vsel %vm50, %v1513, 0
    %v1609 = vsel %vm50, %v1515, 0
    %v1612 = vsel %vm50, %v1517, 0
    %v1615 = vsel %vm50, %v1519, 0
    %v1618 = vsel %vm50, %v1521, 0
    %v1621 = vsel %vm50, %v1523, 0
    %v1624 = vsel %vm50, %v1525, 0
    %v1627 = vsel %vm50, %v1527, 0
    %v1630 = vsel %vm50, %v1529, 0
    %v1633 = vsel %vm50, %v1531, 0
    %v1636 = vsel %vm50, %v1533, 0
    %v1639 = vsel %vm50, %v1535, 0
    %v1642 = vsel %vm50, %v1537, 0
    %v1645 = vsel %vm50, %v1539, 0
    %v1648 = vsel %vm50, %v1541, 0
    %v1651 = vsel %vm50, %v1543, 0
    %v1654 = vsel %vm50, %v1545, 0
    %v1657 = vsel %vm50, %v1547, 0
    %v1660 = vsel %vm50, %v1549, 0
    %v1663 = vsel %vm50, %v1551, 0
    %v1666 = vsel %vm50, %v1553, 0
    %v1669 = vsel %vm50, %v1555, 0
    %v1672 = vsel %vm50, %v1557, 0
    %v1675 = vsel %vm50, %v1559, 0
    %v1678 = vsel %vm50, %v1561, 0
    %v1681 = vsel %vm50, %v1563, 0
    %v1684 = vsel %vm50, %v1565, 0
    %v1687 = vsel %vm50, %v1567, 0
    %1689 = vmatprep.subr.mxu0 0.0
    %1690 = vmatpush1.msra.mxu0 %v1568
    %1691 = vmatprep.subr.mxu0 0.0
    %1692 = vmatpush1.msra.mxu0 %v1569
    %1693 = vmatprep.subr.mxu0 0.0
    %1694 = vmatpush1.msra.mxu0 %v1570
    %1695 = vmatprep.subr.mxu0 0.0
    %1696 = vmatpush1.msra.mxu0 %v1571
    %1697 = vmatprep.subr.mxu0 0.0
    %1698 = vmatpush1.msra.mxu0 %v1572
    %1699 = vmatprep.subr.mxu0 0.0
    %1700 = vmatpush1.msra.mxu0 %v1573
    %1701 = vmatprep.subr.mxu0 0.0
    %1702 = vmatpush1.msra.mxu0 %v1574
    %1703 = vmatprep.subr.mxu0 0.0
    %1704 = vmatpush1.msra.mxu0 %v1575
    %1705 = vmatprep.subr.mxu0 0.0
    %1706 = vmatpush1.msra.mxu0 %v1576
    %1707 = vmatprep.subr.mxu0 0.0
    %1708 = vmatpush1.msra.mxu0 %v1577
    %1709 = vmatprep.subr.mxu0 0.0
    %1710 = vmatpush1.msra.mxu0 %v1578
    %1711 = vmatprep.subr.mxu0 0.0
    %1712 = vmatpush1.msra.mxu0 %v1579
    %1713 = vmatprep.subr.mxu0 0.0
    %1714 = vmatpush1.msra.mxu0 %v1580
    %1715 = vmatprep.subr.mxu0 0.0
    %1716 = vmatpush1.msra.mxu0 %v1581
    %1717 = vmatprep.subr.mxu0 0.0
    %1718 = vmatpush1.msra.mxu0 %v1582
    %1719 = vmatprep.subr.mxu0 0.0
    %1720 = vmatpush1.msra.mxu0 %v1583
    %1721 = vmatprep.subr.mxu0 0.0
    %1722 = vmatpush1.msra.mxu0 %v1584
    %1723 = vmatprep.subr.mxu0 0.0
    %1724 = vmatpush1.msra.mxu0 %v1585
    %1725 = vmatprep.subr.mxu0 0.0
    %1726 = vmatpush1.msra.mxu0 0.0
    %1727 = vmatprep.subr.mxu0 0.0
    %1728 = vmatpush1.msra.mxu0 0.0
    %1729 = vmatprep.subr.mxu0 0.0
    %1730 = vmatpush1.msra.mxu0 0.0
    %1731 = vmatprep.subr.mxu0 0.0
    %1732 = vmatpush1.msra.mxu0 0.0
    %1733 = vmatprep.subr.mxu0 0.0
    %1734 = vmatpush1.msra.mxu0 0.0
    %1735 = vmatprep.subr.mxu0 0.0
    %1736 = vmatpush1.msra.mxu0 0.0
    %1737 = vmatprep.subr.mxu0 0.0
    %1738 = vmatpush1.msra.mxu0 0.0
    %1739 = vmatprep.subr.mxu0 0.0
    %1740 = vmatpush1.msra.mxu0 0.0
    %1741 = vmatprep.subr.mxu0 0.0
    %1742 = vmatpush1.msra.mxu0 0.0
    %1743 = vmatprep.subr.mxu0 0.0
    %1744 = vmatpush1.msra.mxu0 0.0
    %1745 = vmatprep.subr.mxu0 0.0
    %1746 = vmatpush1.msra.mxu0 0.0
    %1747 = vmatprep.subr.mxu0 0.0
    %1748 = vmatpush1.msra.mxu0 0.0
    %1749 = vmatprep.subr.mxu0 0.0
    %1750 = vmatpush1.msra.mxu0 0.0
    %1751 = vmatprep.subr.mxu0 0.0
    %1752 = vmatpush1.msra.mxu0 0.0
    %1753 = vmatprep.mubr.f32.mxu0 %v1594
    %1754 = vmatmul.mubr.f32.gmra.mrb[0].mxu0 %v1504
    %v1755 = vpop.f32.mrb[0].mxu0
    %v1756 = vadd.f32 %v1591, %v1755
    %v1757 = vpop.f32.mrb[0].mxu0
    %1758 = vmatprep.mubr.f32.mxu0 %v1597
    %1759 = vmatmul.mubr.f32.gmra.mrb[0].mxu0 %v1506
    %v1760 = vpop.f32.mrb[0].mxu0
    %v1761 = vadd.f32 %v1591, %v1760
    %v1762 = vpop.f32.mrb[0].mxu0
    %1763 = vmatprep.mubr.f32.mxu0 %v1600
    %1764 = vmatmul.mubr.f32.gmra.mrb[0].mxu0 %v1508
    %v1765 = vpop.f32.mrb[0].mxu0
    %v1766 = vadd.f32 %v1591, %v1765
    %v1767 = vpop.f32.mrb[0].mxu0
    %1768 = vmatprep.mubr.f32.mxu0 %v1603
    %1769 = vmatmul.mubr.f32.gmra.mrb[0].mxu0 %v1510
    %v1770 = vpop.f32.mrb[0].mxu0
    %v1771 = vadd.f32 %v1591, %v1770
    %v1772 = vpop.f32.mrb[0].mxu0
    %1773 = vmatprep.mubr.f32.mxu0 %v1606
    %1774 = vmatmul.mubr.f32.gmra.mrb[0].mxu0 %v1512
    %v1775 = vpop.f32.mrb[0].mxu0
    %v1776 = vadd.f32 %v1591, %v1775
    %v1777 = vpop.f32.mrb[0].mxu0
    %1778 = vmatprep.mubr.f32.mxu0 %v1609
    %1779 = vmatmul.mubr.f32.gmra.mrb[0].mxu0 %v1514
    %v1780 = vpop.f32.mrb[0].mxu0
    %v1781 = vadd.f32 %v1591, %v1780
    %v1782 = vpop.f32.mrb[0].mxu0
    %1783 = vmatprep.mubr.f32.mxu0 %v1612
    %1784 = vmatmul.mubr.f32.gmra.mrb[0].mxu0 %v1516
    %v1785 = vpop.f32.mrb[0].mxu0
    %v1786 = vadd.f32 %v1591, %v1785
    %v1787 = vpop.f32.mrb[0].mxu0
    %1788 = vmatprep.mubr.f32.mxu0 %v1615
    %1789 = vmatmul.mubr.f32.gmra.mrb[0].mxu0 %v1518
    %v1790 = vpop.f32.mrb[0].mxu0
    %v1791 = vadd.f32 %v1591, %v1790
    %v1792 = vpop.f32.mrb[0].mxu0
    %1793 = vmatprep.mubr.f32.mxu0 %v1618
    %1794 = vmatmul.mubr.f32.gmra.mrb[0].mxu0 %v1520
    %v1795 = vpop.f32.mrb[0].mxu0
    %v1796 = vadd.f32 %v1591, %v1795
    %v1797 = vpop.f32.mrb[0].mxu0
    %1798 = vmatprep.mubr.f32.mxu0 %v1621
    %1799 = vmatmul.mubr.f32.gmra.mrb[0].mxu0 %v1522
    %v1800 = vpop.f32.mrb[0].mxu0
    %v1801 = vadd.f32 %v1591, %v1800
    %v1802 = vpop.f32.mrb[0].mxu0
    %1803 = vmatprep.mubr.f32.mxu0 %v1624
    %1804 = vmatmul.mubr.f32.gmra.mrb[0].mxu0 %v1524
    %v1805 = vpop.f32.mrb[0].mxu0
    %v1806 = vadd.f32 %v1591, %v1805
    %v1807 = vpop.f32.mrb[0].mxu0
    %1808 = vmatprep.mubr.f32.mxu0 %v1627
    %1809 = vmatmul.mubr.f32.gmra.mrb[0].mxu0 %v1526
    %v1810 = vpop.f32.mrb[0].mxu0
    %v1811 = vadd.f32 %v1591, %v1810
    %v1812 = vpop.f32.mrb[0].mxu0
    %1813 = vmatprep.mubr.f32.mxu0 %v1630
    %1814 = vmatmul.mubr.f32.gmra.mrb[0].mxu0 %v1528
    %v1815 = vpop.f32.mrb[0].mxu0
    %v1816 = vadd.f32 %v1591, %v1815
    %v1817 = vpop.f32.mrb[0].mxu0
    %1818 = vmatprep.mubr.f32.mxu0 %v1633
    %1819 = vmatmul.mubr.f32.gmra.mrb[0].mxu0 %v1530
    %v1820 = vpop.f32.mrb[0].mxu0
    %v1821 = vadd.f32 %v1591, %v1820
    %v1822 = vpop.f32.mrb[0].mxu0
    %1823 = vmatprep.mubr.f32.mxu0 %v1636
    %1824 = vmatmul.mubr.f32.gmra.mrb[0].mxu0 %v1532
    %v1825 = vpop.f32.mrb[0].mxu0
    %v1826 = vadd.f32 %v1591, %v1825
    %v1827 = vpop.f32.mrb[0].mxu0
    %1828 = vmatprep.mubr.f32.mxu0 %v1639
    %1829 = vmatmul.mubr.f32.gmra.mrb[0].mxu0 %v1534
    %v1830 = vpop.f32.mrb[0].mxu0
    %v1831 = vadd.f32 %v1591, %v1830
    %v1832 = vpop.f32.mrb[0].mxu0
    %1833 = vmatprep.mubr.f32.mxu0 %v1642
    %1834 = vmatmul.mubr.f32.gmra.mrb[0].mxu0 %v1536
    %v1835 = vpop.f32.mrb[0].mxu0
    %v1836 = vadd.f32 %v1591, %v1835
    %v1837 = vpop.f32.mrb[0].mxu0
    %1838 = vmatprep.mubr.f32.mxu0 %v1645
    %1839 = vmatmul.mubr.f32.gmra.mrb[0].mxu0 %v1538
    %v1840 = vpop.f32.mrb[0].mxu0
    %v1841 = vadd.f32 %v1591, %v1840
    %v1842 = vpop.f32.mrb[0].mxu0
    %1843 = vmatprep.mubr.f32.mxu0 %v1648
    %1844 = vmatmul.mubr.f32.gmra.mrb[0].mxu0 %v1540
    %v1845 = vpop.f32.mrb[0].mxu0
    %v1846 = vadd.f32 %v1591, %v1845
    %v1847 = vpop.f32.mrb[0].mxu0
    %1848 = vmatprep.mubr.f32.mxu0 %v1651
    %1849 = vmatmul.mubr.f32.gmra.mrb[0].mxu0 %v1542
    %v1850 = vpop.f32.mrb[0].mxu0
    %v1851 = vadd.f32 %v1591, %v1850
    %v1852 = vpop.f32.mrb[0].mxu0
    %1853 = vmatprep.mubr.f32.mxu0 %v1654
    %1854 = vmatmul.mubr.f32.gmra.mrb[0].mxu0 %v1544
    %v1855 = vpop.f32.mrb[0].mxu0
    %v1856 = vadd.f32 %v1591, %v1855
    %v1857 = vpop.f32.mrb[0].mxu0
    %1858 = vmatprep.mubr.f32.mxu0 %v1657
    %1859 = vmatmul.mubr.f32.gmra.mrb[0].mxu0 %v1546
    %v1860 = vpop.f32.mrb[0].mxu0
    %v1861 = vadd.f32 %v1591, %v1860
    %v1862 = vpop.f32.mrb[0].mxu0
    %1863 = vmatprep.mubr.f32.mxu0 %v1660
    %1864 = vmatmul.mubr.f32.gmra.mrb[0].mxu0 %v1548
    %v1865 = vpop.f32.mrb[0].mxu0
    %v1866 = vadd.f32 %v1591, %v1865
    %v1867 = vpop.f32.mrb[0].mxu0
    %1868 = vmatprep.mubr.f32.mxu0 %v1663
    %1869 = vmatmul.mubr.f32.gmra.mrb[0].mxu0 %v1550
    %v1870 = vpop.f32.mrb[0].mxu0
    %v1871 = vadd.f32 %v1591, %v1870
    %v1872 = vpop.f32.mrb[0].mxu0
    %1873 = vmatprep.mubr.f32.mxu0 %v1666
    %1874 = vmatmul.mubr.f32.gmra.mrb[0].mxu0 %v1552
    %v1875 = vpop.f32.mrb[0].mxu0
    %v1876 = vadd.f32 %v1591, %v1875
    %v1877 = vpop.f32.mrb[0].mxu0
    %1878 = vmatprep.mubr.f32.mxu0 %v1669
    %1879 = vmatmul.mubr.f32.gmra.mrb[0].mxu0 %v1554
    %v1880 = vpop.f32.mrb[0].mxu0
    %v1881 = vadd.f32 %v1591, %v1880
    %v1882 = vpop.f32.mrb[0].mxu0
    %1883 = vmatprep.mubr.f32.mxu0 %v1672
    %1884 = vmatmul.mubr.f32.gmra.mrb[0].mxu0 %v1556
    %v1885 = vpop.f32.mrb[0].mxu0
    %v1886 = vadd.f32 %v1591, %v1885
    %v1887 = vpop.f32.mrb[0].mxu0
    %1888 = vmatprep.mubr.f32.mxu0 %v1675
    %1889 = vmatmul.mubr.f32.gmra.mrb[0].mxu0 %v1558
    %v1890 = vpop.f32.mrb[0].mxu0
    %v1891 = vadd.f32 %v1591, %v1890
    %v1892 = vpop.f32.mrb[0].mxu0
    %1893 = vmatprep.mubr.f32.mxu0 %v1678
    %1894 = vmatmul.mubr.f32.gmra.mrb[0].mxu0 %v1560
    %v1895 = vpop.f32.mrb[0].mxu0
    %v1896 = vadd.f32 %v1591, %v1895
    %v1897 = vpop.f32.mrb[0].mxu0
    %1898 = vmatprep.mubr.f32.mxu0 %v1681
    %1899 = vmatmul.mubr.f32.gmra.mrb[0].mxu0 %v1562
    %v1900 = vpop.f32.mrb[0].mxu0
    %v1901 = vadd.f32 %v1591, %v1900
    %v1902 = vpop.f32.mrb[0].mxu0
    %1903 = vmatprep.mubr.f32.mxu0 %v1684
    %1904 = vmatmul.mubr.f32.gmra.mrb[0].mxu0 %v1564
    %v1905 = vpop.f32.mrb[0].mxu0
    %v1906 = vadd.f32 %v1591, %v1905
    %v1907 = vpop.f32.mrb[0].mxu0
    %1908 = vmatprep.mubr.f32.mxu0 %v1687
    %1909 = vmatmul.mubr.f32.gmra.mrb[0].mxu0 %v1566
    %v1910 = vpop.f32.mrb[0].mxu0
    %v1911 = vadd.f32 %v1591, %v1910
    %v1912 = vpop.f32.mrb[0].mxu0
    %1913 = vdwg.mxu0
    %vm1914 = vcmask 261120
    %1915 = vst.msk [vmem:[#allocation3] sm:$0xff] %vm1914, %v1756
    %1916 = vst.msk [vmem:[#allocation3 + $0x8] sm:$0xff] %vm1914, %v1761
    %1917 = vst.msk [vmem:[#allocation3 + $0x10] sm:$0xff] %vm1914, %v1766
    %1918 = vst.msk [vmem:[#allocation3 + $0x18] sm:$0xff] %vm1914, %v1771
    %1919 = vst.msk [vmem:[#allocation3 + $0x20] sm:$0xff] %vm1914, %v1776
    %1920 = vst.msk [vmem:[#allocation3 + $0x28] sm:$0xff] %vm1914, %v1781
    %1921 = vst.msk [vmem:[#allocation3 + $0x30] sm:$0xff] %vm1914, %v1786
    %1922 = vst.msk [vmem:[#allocation3 + $0x38] sm:$0xff] %vm1914, %v1791
    %1923 = vst.msk [vmem:[#allocation3 + $0x40] sm:$0xff] %vm1914, %v1796
    %1924 = vst.msk [vmem:[#allocation3 + $0x48] sm:$0xff] %vm1914, %v1801
    %1925 = vst.msk [vmem:[#allocation3 + $0x50] sm:$0xff] %vm1914, %v1806
    %1926 = vst.msk [vmem:[#allocation3 + $0x58] sm:$0xff] %vm1914, %v1811
    %1927 = vst.msk [vmem:[#allocation3 + $0x60] sm:$0xff] %vm1914, %v1816
    %1928 = vst.msk [vmem:[#allocation3 + $0x68] sm:$0xff] %vm1914, %v1821
    %1929 = vst.msk [vmem:[#allocation3 + $0x70] sm:$0xff] %vm1914, %v1826
    %1930 = vst.msk [vmem:[#allocation3 + $0x78] sm:$0xff] %vm1914, %v1831
    %1931 = vst.msk [vmem:[#allocation3 + $0x80] sm:$0xff] %vm1914, %v1836
    %1932 = vst.msk [vmem:[#allocation3 + $0x88] sm:$0xff] %vm1914, %v1841
    %1933 = vst.msk [vmem:[#allocation3 + $0x90] sm:$0xff] %vm1914, %v1846
    %1934 = vst.msk [vmem:[#allocation3 + $0x98] sm:$0xff] %vm1914, %v1851
    %1935 = vst.msk [vmem:[#allocation3 + $0xa0] sm:$0xff] %vm1914, %v1856
    %1936 = vst.msk [vmem:[#allocation3 + $0xa8] sm:$0xff] %vm1914, %v1861
    %1937 = vst.msk [vmem:[#allocation3 + $0xb0] sm:$0xff] %vm1914, %v1866
    %1938 = vst.msk [vmem:[#allocation3 + $0xb8] sm:$0xff] %vm1914, %v1871
    %1939 = vst.msk [vmem:[#allocation3 + $0xc0] sm:$0xff] %vm1914, %v1876
    %1940 = vst.msk [vmem:[#allocation3 + $0xc8] sm:$0xff] %vm1914, %v1881
    %1941 = vst.msk [vmem:[#allocation3 + $0xd0] sm:$0xff] %vm1914, %v1886
    %1942 = vst.msk [vmem:[#allocation3 + $0xd8] sm:$0xff] %vm1914, %v1891
    %1943 = vst.msk [vmem:[#allocation3 + $0xe0] sm:$0xff] %vm1914, %v1896
    %1944 = vst.msk [vmem:[#allocation3 + $0xe8] sm:$0xff] %vm1914, %v1901
    %1945 = vst.msk [vmem:[#allocation3 + $0xf0] sm:$0xff] %vm1914, %v1906
    %1946 = vst.msk [vmem:[#allocation3 + $0xf8] sm:$0xff] %vm1914, %v1911
    // Predicated region
    $region14: #{tpu_custom_call.1} parent=1 // pred_check
      _
    $region15: #{tpu_custom_call.1} parent=1 // pred_check_branch
      %1948 = sbr.rel (0) target = $region17
    $region16: #{tpu_custom_call.1} parent=1 // pred_region
      %s1950 = ssub.s32 4096, 4096
      %1951 = vsyncadd [#allocation4], %s1950
      %s1952 = sshll.u32 [#allocation3], 4
      %s1953 = int_to_ptr.vmem [resolvable:$true] %s1952
      %1958 = dma.vmem_to_hbm [thread:$0]  %s1953, 4096, %s3, [#allocation4], 128, 128, 8
    $region17: #{tpu_custom_call.1} parent=1 // pred_fallthru
      _
    // Predicated region
    $region18: #{tpu_custom_call.1} parent=1 // pred_check
      _
    $region19: #{tpu_custom_call.1} parent=1 // pred_check_branch
      %1960 = sbr.rel (0) target = $region21
    $region20: #{tpu_custom_call.1} parent=1 // pred_region
      %1961 = dma.done [#allocation4], 4096
    $region21: #{tpu_custom_call.1} parent=1 // pred_fallthru
      _
    %1962 = vsyncpa [#allocation4], 1

</llo_original>
